<compile_context>
chip_gen: v7x
topology: tpu7x:2x2x1
jax: 0.10.0
libtpu: 0.0.40
codegen_flags: <defaults>
</compile_context>

<pallas_src>
import jax
import jax.numpy as jnp
from jax.experimental import pallas as pl
from jax.experimental.pallas import tpu as pltpu  # noqa: F401  (not needed at this footprint)

_LANE = 128
_SUBLANE = 8
_HIGHEST = jax.lax.Precision.HIGHEST


def _round_up(n, m):
    return ((n + m - 1) // m) * m


def _sigmoid(v):
    # Exact sigmoid via a single EUP tanh (instead of exp + approx reciprocal).
    return 0.5 * (jnp.tanh(0.5 * v) + 1.0)


def _passcell2_kernel(z_ref, w1_ref, wy_ref, out_ref):
    hp = wy_ref.shape[0]  # padded hidden size (static, lane-aligned)

    # Single fused MXU dot: columns [0:hp] -> z_temp, [hp:2*hp] -> f partial.
    # Bias is folded in via the ones column of z and the bias row of w1.
    t = jnp.dot(z_ref[...], w1_ref[...],
                preferred_element_type=jnp.float32, precision=_HIGHEST)

    o_new = _sigmoid(t[:, :hp])
    # Padding columns of o_new (sigmoid(0)=0.5) hit zero rows of wy_pad -> no contamination.
    o_temp = jnp.dot(o_new, wy_ref[...],
                     preferred_element_type=jnp.float32, precision=_HIGHEST)
    f = _sigmoid(t[:, hp:] + o_temp)

    # Lane-aligned (8,128)-tile stores -> unmasked vst, single writeback DMA.
    out_ref[:, :hp] = o_new.astype(out_ref.dtype)
    out_ref[:, hp:] = f.astype(out_ref.dtype)


def pack_params(params, input_length, hidden_length):
    """Stack + zero-pad the logical weights once (outside the per-step call).

    w1 layout (KP, 2*HP):
      rows [0:H)      -> h weights   [wz_h | wh]
      rows [H:H+I)    -> x weights   [wz_x | wu]
      row  H+I        -> biases      [bz   | bu]   (paired with the ones column of z)
      remaining rows / columns are zero padding.
    """
    H, I = hidden_length, input_length
    HP = _round_up(H, _LANE)
    K = H + I + 1                       # h + x + bias-ones column
    KP = _round_up(K, _LANE)

    w1 = jnp.zeros((KP, 2 * HP), jnp.float32)
    w1 = w1.at[:H, :H].set(params["wz_h"])
    w1 = w1.at[:H, HP:HP + H].set(params["wh"])
    w1 = w1.at[H:H + I, :H].set(params["wz_x"])
    w1 = w1.at[H:H + I, HP:HP + H].set(params["wu"])
    w1 = w1.at[H + I, :H].set(params["bz"][0])
    w1 = w1.at[H + I, HP:HP + H].set(params["bu"][0])

    wy_pad = jnp.zeros((HP, HP), jnp.float32).at[:H, :H].set(params["wy"])

    return dict(w1=w1, wy_pad=wy_pad, HP=HP, KP=KP)


def passcell2_forward(x, o, h, packed, *, input_length, hidden_length):
    """x:(B, input_len)  o,h:(B, hidden)  -> (o_new, f) each (B, hidden), float32."""
    del o  # overwritten before use in the reference forward
    B = x.shape[0]
    H, I = hidden_length, input_length
    HP, KP = packed["HP"], packed["KP"]
    BP = _round_up(B, _SUBLANE)

    # Build z = [h | x | 1] once, zero-padded to an (8,128)-aligned tile.
    # (For a multi-step driver, keep z/out in this padded layout between steps and
    #  slice only at the very end.)
    z = jnp.concatenate(
        [h.astype(jnp.float32), x.astype(jnp.float32), jnp.ones((B, 1), jnp.float32)],
        axis=1)
    z_pad = jnp.zeros((BP, KP), jnp.float32).at[:B, :H + I + 1].set(z)

    full = lambda a: pl.BlockSpec(a.shape, lambda: (0,) * a.ndim)

    out = pl.pallas_call(
        _passcell2_kernel,
        out_shape=jax.ShapeDtypeStruct((BP, 2 * HP), jnp.float32),
        grid=(),
        in_specs=[full(z_pad), full(packed["w1"]), full(packed["wy_pad"])],
        out_specs=pl.BlockSpec((BP, 2 * HP), lambda: (0, 0)),
    )(z_pad, packed["w1"], packed["wy_pad"])

    o_new = out[:B, :H]
    f = out[:B, HP:HP + H]
    return o_new, f


def init_params(key, input_length, hidden_length):
    """Deterministic, PyTorch-Linear-style uniform init (synthetic weights)."""
    ks = jax.random.split(key, 6)

    def unif(k, shape, fan_in):
        bound = 1.0 / jnp.sqrt(jnp.float32(fan_in))
        return jax.random.uniform(k, shape, jnp.float32, -bound, bound)

    # linear_i_z2: weight (hidden, hidden+input), bias (hidden)
    wz_full = unif(ks[0], (hidden_length, hidden_length + input_length),
                   hidden_length + input_length)
    bz = unif(ks[1], (1, hidden_length), hidden_length + input_length)
    # split columns: cat([h, x]) -> first `hidden` cols act on h, rest on x
    wz_h = wz_full[:, :hidden_length].T          # (hidden, hidden)
    wz_x = wz_full[:, hidden_length:].T          # (input, hidden)

    # linear_f_u1: (hidden, input) + bias
    wu = unif(ks[2], (hidden_length, input_length), input_length).T   # (input, hidden)
    bu = unif(ks[3], (1, hidden_length), input_length)
    # linear_f_h1 / linear_f_y1: (hidden, hidden), no bias
    wh = unif(ks[4], (hidden_length, hidden_length), hidden_length).T
    wy = unif(ks[5], (hidden_length, hidden_length), hidden_length).T

    return dict(wz_h=wz_h, wz_x=wz_x, bz=bz, wu=wu, bu=bu, wh=wh, wy=wy)


def _reference(x, h, p):
    dot = lambda a, b: jnp.dot(a, b, precision=_HIGHEST)
    z_temp = dot(h, p["wz_h"]) + dot(x, p["wz_x"]) + p["bz"]
    o_new = jax.nn.sigmoid(z_temp)
    f = jax.nn.sigmoid(dot(x, p["wu"]) + p["bu"] + dot(h, p["wh"]) + dot(o_new, p["wy"]))
    return o_new, f


if __name__ == "__main__":
    input_length, hidden_length, batch = 3, 20, 2

    key = jax.random.PRNGKey(0)
    kx, ko, kh, kp = jax.random.split(key, 4)
    x = jax.random.normal(kx, (batch, input_length), jnp.float32)
    o = jax.random.normal(ko, (batch, hidden_length), jnp.float32)
    h = jax.random.normal(kh, (batch, hidden_length), jnp.float32)
    params = init_params(kp, input_length, hidden_length)
    packed = pack_params(params, input_length, hidden_length)

    o_new, f = passcell2_forward(x, o, h, packed,
                                 input_length=input_length,
                                 hidden_length=hidden_length)
    jax.block_until_ready((o_new, f))

    o_ref, f_ref = _reference(x, h, params)
    # Exact sigmoid + highest-precision dots -> tight agreement with the f32 reference.
    assert jnp.allclose(o_new, o_ref, atol=1e-3, rtol=0), float(jnp.max(jnp.abs(o_new - o_ref)))
    assert jnp.allclose(f, f_ref, atol=1e-3, rtol=0), float(jnp.max(jnp.abs(f - f_ref)))
    assert o_new.shape == (batch, hidden_length) and f.shape == (batch, hidden_length)

    print("KERNEL_OK")
</pallas_src>

<mosaic_0001>
module attributes {stable_mosaic.version = 11 : i64} {
  func.func @_passcell2_kernel(%arg0: memref<8x128xf32, #tpu.memory_space<vmem>>, %arg1: memref<128x256xf32, #tpu.memory_space<vmem>>, %arg2: memref<128x128xf32, #tpu.memory_space<vmem>>, %arg3: memref<8x256xf32, #tpu.memory_space<vmem>>) attributes {dimension_semantics = [], scalar_prefetch = 0 : i64, scratch_operands = 0 : i64, tpu.core_type = #tpu.core_type<tc>} {
    %c0 = arith.constant 0 : index
    %c0_0 = arith.constant 0 : index
    %0 = vector.load %arg0[%c0, %c0_0] : memref<8x128xf32, #tpu.memory_space<vmem>>, vector<8x128xf32>
    %c0_1 = arith.constant 0 : index
    %c0_2 = arith.constant 0 : index
    %1 = vector.load %arg1[%c0_1, %c0_2] : memref<128x256xf32, #tpu.memory_space<vmem>>, vector<128x256xf32>
    %cst = arith.constant dense<0.000000e+00> : vector<8x256xf32>
    %2 = tpu.matmul %0, %1, %cst {dimension_numbers = #tpu.dot_dimension_numbers<[1], [0], [0], [1], [0, 0, 1, 1], [], []>, precision = #tpu.contract_precision<fp32>} : vector<8x128xf32>, vector<128x256xf32>, vector<8x256xf32> -> vector<8x256xf32>
    %3 = vector.extract_strided_slice %2 {offsets = [0, 0], sizes = [8, 128], strides = [1, 1]} : vector<8x256xf32> to vector<8x128xf32>
    %cst_3 = arith.constant 5.000000e-01 : f32
    %4 = vector.broadcast %cst_3 : f32 to vector<8x128xf32>
    %5 = arith.mulf %4, %3 : vector<8x128xf32>
    %6 = math.tanh %5 : vector<8x128xf32>
    %cst_4 = arith.constant 1.000000e+00 : f32
    %7 = vector.broadcast %cst_4 : f32 to vector<8x128xf32>
    %8 = arith.addf %6, %7 : vector<8x128xf32>
    %cst_5 = arith.constant 5.000000e-01 : f32
    %9 = vector.broadcast %cst_5 : f32 to vector<8x128xf32>
    %10 = arith.mulf %9, %8 : vector<8x128xf32>
    %c0_6 = arith.constant 0 : index
    %c0_7 = arith.constant 0 : index
    %11 = vector.load %arg2[%c0_6, %c0_7] : memref<128x128xf32, #tpu.memory_space<vmem>>, vector<128x128xf32>
    %cst_8 = arith.constant dense<0.000000e+00> : vector<8x128xf32>
    %12 = tpu.matmul %10, %11, %cst_8 {dimension_numbers = #tpu.dot_dimension_numbers<[1], [0], [0], [1], [0, 0, 1, 1], [], []>, precision = #tpu.contract_precision<fp32>} : vector<8x128xf32>, vector<128x128xf32>, vector<8x128xf32> -> vector<8x128xf32>
    %13 = vector.extract_strided_slice %2 {offsets = [0, 128], sizes = [8, 128], strides = [1, 1]} : vector<8x256xf32> to vector<8x128xf32>
    %14 = arith.addf %13, %12 : vector<8x128xf32>
    %cst_9 = arith.constant 5.000000e-01 : f32
    %15 = vector.broadcast %cst_9 : f32 to vector<8x128xf32>
    %16 = arith.mulf %15, %14 : vector<8x128xf32>
    %17 = math.tanh %16 : vector<8x128xf32>
    %cst_10 = arith.constant 1.000000e+00 : f32
    %18 = vector.broadcast %cst_10 : f32 to vector<8x128xf32>
    %19 = arith.addf %17, %18 : vector<8x128xf32>
    %cst_11 = arith.constant 5.000000e-01 : f32
    %20 = vector.broadcast %cst_11 : f32 to vector<8x128xf32>
    %21 = arith.mulf %20, %19 : vector<8x128xf32>
    %c0_12 = arith.constant 0 : index
    %c0_13 = arith.constant 0 : index
    %22 = vector.load %arg3[%c0_12, %c0_13] : memref<8x256xf32, #tpu.memory_space<vmem>>, vector<8x128xf32>
    tpu.vector_store %arg3[%c0_12, %c0_13], %10 {strides = array<i32>} : memref<8x256xf32, #tpu.memory_space<vmem>>, vector<8x128xf32>,
    %c0_14 = arith.constant 0 : index
    %c128 = arith.constant 128 : index
    %23 = vector.load %arg3[%c0_14, %c128] : memref<8x256xf32, #tpu.memory_space<vmem>>, vector<8x128xf32>
    tpu.vector_store %arg3[%c0_14, %c128], %21 {strides = array<i32>} : memref<8x256xf32, #tpu.memory_space<vmem>>, vector<8x128xf32>,
    return
  }
}

</mosaic_0001>

<llo_original>
// kernel: tpu_custom_call.1
$region0: #{tpu_custom_call.1}
  #allocation0 [shape = 'u32[]', space=smem, size = 0x4, offset = 0x4, fixed_abs, tag = 'smem constant byte address 0x4 - core index']
  #allocation1 [shape = 'u32[144,128]{1,0:T(1,128)}', space=vmem, size = 0x12000, scoped, tag = 'internal scratch']
  %s0 = inlined_call_operand.hbm [shape: f32[8,128], index: 0, kind: input, shape index: {}]
  %s1 = inlined_call_operand.hbm [shape: f32[128,256], index: 1, kind: input, shape index: {}]
  %s2 = inlined_call_operand.hbm [shape: f32[128,128], index: 2, kind: input, shape index: {}]
  %s3 = inlined_call_operand.hbm [shape: f32[8,256], index: 3, kind: output, shape index: {}]
  %s4 = sld [smem:[#allocation0]]
  $region34: #{tpu_custom_call.1} parent=0
    _
  %s6 = ssub.s32 1, %s4
  %s7 = scalar_select 0, %s6, %s4
  $region1: #{tpu_custom_call.1} parent=0
    #allocation2 [shape = 'u8[4096]{0}', space=vmem, size = 0x1000, scoped, tag = 'input window, operand 0, single buffered']
    #allocation3 [shape = 's32[1]{0}', space=sflag, size = 0x4, scoped, tag = 'scoped memory for tpu_custom_call.1']
    #allocation4 [shape = 's32[1]{0}', space=sflag, size = 0x4, scoped, tag = 'scoped memory for tpu_custom_call.1']
    #allocation5 [shape = 'u8[131072]{0}', space=vmem, size = 0x20000, scoped, tag = 'input window, operand 1, single buffered']
    #allocation6 [shape = 's32[1]{0}', space=sflag, size = 0x4, scoped, tag = 'scoped memory for tpu_custom_call.1']
    #allocation7 [shape = 'u8[65536]{0}', space=vmem, size = 0x10000, scoped, tag = 'input window, operand 2, single buffered']
    #allocation8 [shape = 'u8[8192]{0}', space=vmem, size = 0x2000, scoped, tag = 'output window, operand 0, single buffered']
    %8 = vsyncpa [#allocation3], 0
    %9 = vsyncpa [#allocation6], 0
    %10 = vsyncpa [#allocation4], 0
    // Predicated region
    $region2: #{tpu_custom_call.1} parent=1 // pred_check
      _
    $region3: #{tpu_custom_call.1} parent=1 // pred_check_branch
      %12 = sbr.rel (0) target = $region5
    $region4: #{tpu_custom_call.1} parent=1 // pred_region
      %s14 = ssub.s32 128, 128
      %15 = vsyncadd [#allocation3], %s14
      %s17 = sshll.u32 [#allocation2], 4
      %s18 = int_to_ptr.vmem [resolvable:$true] %s17
      %20 = dma.hbm_to_vmem [thread:$0]  %s0, 128, %s18, [#allocation3]
    $region5: #{tpu_custom_call.1} parent=1 // pred_fallthru
      _
    // Predicated region
    $region6: #{tpu_custom_call.1} parent=1 // pred_check
      _
    $region7: #{tpu_custom_call.1} parent=1 // pred_check_branch
      %22 = sbr.rel (0) target = $region9
    $region8: #{tpu_custom_call.1} parent=1 // pred_region
      %s24 = ssub.s32 4096, 4096
      %25 = vsyncadd [#allocation6], %s24
      %s26 = sshll.u32 [#allocation5], 4
      %s27 = int_to_ptr.vmem [resolvable:$true] %s26
      %32 = dma.hbm_to_vmem [thread:$0]  %s1, 4096, %s27, [#allocation6], 256, 256, 16
    $region9: #{tpu_custom_call.1} parent=1 // pred_fallthru
      _
    // Predicated region
    $region10: #{tpu_custom_call.1} parent=1 // pred_check
      _
    $region11: #{tpu_custom_call.1} parent=1 // pred_check_branch
      %34 = sbr.rel (0) target = $region13
    $region12: #{tpu_custom_call.1} parent=1 // pred_region
      %s36 = ssub.s32 2048, 2048
      %37 = vsyncadd [#allocation6], %s36
      %s38 = sshll.u32 [#allocation7], 4
      %s39 = int_to_ptr.vmem [resolvable:$true] %s38
      %44 = dma.hbm_to_vmem [thread:$0]  %s2, 2048, %s39, [#allocation6], 128, 128, 8
    $region13: #{tpu_custom_call.1} parent=1 // pred_fallthru
      _
    // Predicated region
    $region14: #{tpu_custom_call.1} parent=1 // pred_check
      _
    $region15: #{tpu_custom_call.1} parent=1 // pred_check_branch
      %46 = sbr.rel (0) target = $region17
    $region16: #{tpu_custom_call.1} parent=1 // pred_region
      %47 = dma.done [#allocation3], 128
    $region17: #{tpu_custom_call.1} parent=1 // pred_fallthru
      _
    // Predicated region
    $region18: #{tpu_custom_call.1} parent=1 // pred_check
      _
    $region19: #{tpu_custom_call.1} parent=1 // pred_check_branch
      %49 = sbr.rel (0) target = $region21
    $region20: #{tpu_custom_call.1} parent=1 // pred_region
      %50 = dma.done [#allocation6], 4096
    $region21: #{tpu_custom_call.1} parent=1 // pred_fallthru
      _
    // Predicated region
    $region22: #{tpu_custom_call.1} parent=1 // pred_check
      _
    $region23: #{tpu_custom_call.1} parent=1 // pred_check_branch
      %52 = sbr.rel (0) target = $region25
    $region24: #{tpu_custom_call.1} parent=1 // pred_region
      %53 = dma.done [#allocation6], 2048
    $region25: #{tpu_custom_call.1} parent=1 // pred_fallthru
      _
    %v54 = vld [vmem:[#allocation2] sm:$0xff]
    %v55 = vld [vmem:[#allocation5] sm:$0xff]
    %v56 = vld [vmem:[#allocation5 + $0x8] sm:$0xff]
    %v57 = vld [vmem:[#allocation5 + $0x10] sm:$0xff]
    %v58 = vld [vmem:[#allocation5 + $0x18] sm:$0xff]
    %v59 = vld [vmem:[#allocation5 + $0x20] sm:$0xff]
    %v60 = vld [vmem:[#allocation5 + $0x28] sm:$0xff]
    %v61 = vld [vmem:[#allocation5 + $0x30] sm:$0xff]
    %v62 = vld [vmem:[#allocation5 + $0x38] sm:$0xff]
    %v63 = vld [vmem:[#allocation5 + $0x40] sm:$0xff]
    %v64 = vld [vmem:[#allocation5 + $0x48] sm:$0xff]
    %v65 = vld [vmem:[#allocation5 + $0x50] sm:$0xff]
    %v66 = vld [vmem:[#allocation5 + $0x58] sm:$0xff]
    %v67 = vld [vmem:[#allocation5 + $0x60] sm:$0xff]
    %v68 = vld [vmem:[#allocation5 + $0x68] sm:$0xff]
    %v69 = vld [vmem:[#allocation5 + $0x70] sm:$0xff]
    %v70 = vld [vmem:[#allocation5 + $0x78] sm:$0xff]
    %v71 = vld [vmem:[#allocation5 + $0x80] sm:$0xff]
    %v72 = vld [vmem:[#allocation5 + $0x88] sm:$0xff]
    %v73 = vld [vmem:[#allocation5 + $0x90] sm:$0xff]
    %v74 = vld [vmem:[#allocation5 + $0x98] sm:$0xff]
    %v75 = vld [vmem:[#allocation5 + $0xa0] sm:$0xff]
    %v76 = vld [vmem:[#allocation5 + $0xa8] sm:$0xff]
    %v77 = vld [vmem:[#allocation5 + $0xb0] sm:$0xff]
    %v78 = vld [vmem:[#allocation5 + $0xb8] sm:$0xff]
    %v79 = vld [vmem:[#allocation5 + $0xc0] sm:$0xff]
    %v80 = vld [vmem:[#allocation5 + $0xc8] sm:$0xff]
    %v81 = vld [vmem:[#allocation5 + $0xd0] sm:$0xff]
    %v82 = vld [vmem:[#allocation5 + $0xd8] sm:$0xff]
    %v83 = vld [vmem:[#allocation5 + $0xe0] sm:$0xff]
    %v84 = vld [vmem:[#allocation5 + $0xe8] sm:$0xff]
    %v85 = vld [vmem:[#allocation5 + $0xf0] sm:$0xff]
    %v86 = vld [vmem:[#allocation5 + $0xf8] sm:$0xff]
    %v87 = vand.u32 %v56, 4294901760
    %88 = vmatprep.subr.mxu0 %v87
    %v89 = vand.u32 %v55, 4294901760
    %90 = vmatpush1.msra.mxu0 %v89
    %v91 = vand.u32 %v58, 4294901760
    %92 = vmatprep.subr.mxu0 %v91
    %v93 = vand.u32 %v57, 4294901760
    %94 = vmatpush1.msra.mxu0 %v93
    %v95 = vand.u32 %v60, 4294901760
    %96 = vmatprep.subr.mxu0 %v95
    %v97 = vand.u32 %v59, 4294901760
    %98 = vmatpush1.msra.mxu0 %v97
    %v99 = vand.u32 %v62, 4294901760
    %100 = vmatprep.subr.mxu0 %v99
    %v101 = vand.u32 %v61, 4294901760
    %102 = vmatpush1.msra.mxu0 %v101
    %v103 = vand.u32 %v64, 4294901760
    %104 = vmatprep.subr.mxu0 %v103
    %v105 = vand.u32 %v63, 4294901760
    %106 = vmatpush1.msra.mxu0 %v105
    %v107 = vand.u32 %v66, 4294901760
    %108 = vmatprep.subr.mxu0 %v107
    %v109 = vand.u32 %v65, 4294901760
    %110 = vmatpush1.msra.mxu0 %v109
    %v111 = vand.u32 %v68, 4294901760
    %112 = vmatprep.subr.mxu0 %v111
    %v113 = vand.u32 %v67, 4294901760
    %114 = vmatpush1.msra.mxu0 %v113
    %v115 = vand.u32 %v70, 4294901760
    %116 = vmatprep.subr.mxu0 %v115
    %v117 = vand.u32 %v69, 4294901760
    %118 = vmatpush1.msra.mxu0 %v117
    %v119 = vand.u32 %v72, 4294901760
    %120 = vmatprep.subr.mxu0 %v119
    %v121 = vand.u32 %v71, 4294901760
    %122 = vmatpush1.msra.mxu0 %v121
    %v123 = vand.u32 %v74, 4294901760
    %124 = vmatprep.subr.mxu0 %v123
    %v125 = vand.u32 %v73, 4294901760
    %126 = vmatpush1.msra.mxu0 %v125
    %v127 = vand.u32 %v76, 4294901760
    %128 = vmatprep.subr.mxu0 %v127
    %v129 = vand.u32 %v75, 4294901760
    %130 = vmatpush1.msra.mxu0 %v129
    %v131 = vand.u32 %v78, 4294901760
    %132 = vmatprep.subr.mxu0 %v131
    %v133 = vand.u32 %v77, 4294901760
    %134 = vmatpush1.msra.mxu0 %v133
    %v135 = vand.u32 %v80, 4294901760
    %136 = vmatprep.subr.mxu0 %v135
    %v137 = vand.u32 %v79, 4294901760
    %138 = vmatpush1.msra.mxu0 %v137
    %v139 = vand.u32 %v82, 4294901760
    %140 = vmatprep.subr.mxu0 %v139
    %v141 = vand.u32 %v81, 4294901760
    %142 = vmatpush1.msra.mxu0 %v141
    %v143 = vand.u32 %v84, 4294901760
    %144 = vmatprep.subr.mxu0 %v143
    %v145 = vand.u32 %v83, 4294901760
    %146 = vmatpush1.msra.mxu0 %v145
    %v147 = vand.u32 %v86, 4294901760
    %148 = vmatprep.subr.mxu0 %v147
    %v149 = vand.u32 %v85, 4294901760
    %150 = vmatpush1.msra.mxu0 %v149
    %151 = vmatprep.subr.mxu0 0.0
    %152 = vmatpush1.msra.mxu0 0.0
    %153 = vmatprep.subr.mxu0 0.0
    %154 = vmatpush1.msra.mxu0 0.0
    %155 = vmatprep.subr.mxu0 0.0
    %156 = vmatpush1.msra.mxu0 0.0
    %157 = vmatprep.subr.mxu0 0.0
    %158 = vmatpush1.msra.mxu0 0.0
    %159 = vmatprep.subr.mxu0 0.0
    %160 = vmatpush1.msra.mxu0 0.0
    %161 = vmatprep.subr.mxu0 0.0
    %162 = vmatpush1.msra.mxu0 0.0
    %163 = vmatprep.subr.mxu0 0.0
    %164 = vmatpush1.msra.mxu0 0.0
    %165 = vmatprep.subr.mxu0 0.0
    %166 = vmatpush1.msra.mxu0 0.0
    %167 = vmatprep.subr.mxu0 0.0
    %168 = vmatpush1.msra.mxu0 0.0
    %169 = vmatprep.subr.mxu0 0.0
    %170 = vmatpush1.msra.mxu0 0.0
    %171 = vmatprep.subr.mxu0 0.0
    %172 = vmatpush1.msra.mxu0 0.0
    %173 = vmatprep.subr.mxu0 0.0
    %174 = vmatpush1.msra.mxu0 0.0
    %175 = vmatprep.subr.mxu0 0.0
    %176 = vmatpush1.msra.mxu0 0.0
    %177 = vmatprep.subr.mxu0 0.0
    %178 = vmatpush1.msra.mxu0 0.0
    %179 = vmatprep.subr.mxu0 0.0
    %180 = vmatpush1.msra.mxu0 0.0
    %181 = vmatprep.subr.mxu0 0.0
    %182 = vmatpush1.msra.mxu0 0.0
    %183 = vmatprep.mubr.f32.mxu0 0.0
    %v184 = vand.u32 %v54, 4294901760
    %v185 = vsub.f32 %v54, %v184
    %v186 = vand.u32 %v185, 4294901760
    %v187 = vsub.f32 %v185, %v186
    %v188 = vand.u32 %v187, 4294901760
    %189 = vmatmul.mubr.f32.gmra.mrb[0].mxu0 %v188
    %v190 = vpop.f32.mrb[0].mxu0
    %v191 = vadd.f32 0.0, %v190
    %v192 = vpop.f32.mrb[0].mxu0
    %v193 = vadd.f32 0.0, %v192
    %194 = vdwg.mxu0
    %v195 = vand.u32 %v56, 4294901760
    %v196 = vsub.f32 %v56, %v195
    %v197 = vand.u32 %v196, 4294901760
    %v198 = vsub.f32 %v196, %v197
    %v199 = vand.u32 %v198, 4294901760
    %200 = vmatprep.subr.mxu0 %v199
    %v201 = vand.u32 %v55, 4294901760
    %v202 = vsub.f32 %v55, %v201
    %v203 = vand.u32 %v202, 4294901760
    %v204 = vsub.f32 %v202, %v203
    %v205 = vand.u32 %v204, 4294901760
    %206 = vmatpush1.msra.mxu0 %v205
    %v207 = vand.u32 %v58, 4294901760
    %v208 = vsub.f32 %v58, %v207
    %v209 = vand.u32 %v208, 4294901760
    %v210 = vsub.f32 %v208, %v209
    %v211 = vand.u32 %v210, 4294901760
    %212 = vmatprep.subr.mxu0 %v211
    %v213 = vand.u32 %v57, 4294901760
    %v214 = vsub.f32 %v57, %v213
    %v215 = vand.u32 %v214, 4294901760
    %v216 = vsub.f32 %v214, %v215
    %v217 = vand.u32 %v216, 4294901760
    %218 = vmatpush1.msra.mxu0 %v217
    %v219 = vand.u32 %v60, 4294901760
    %v220 = vsub.f32 %v60, %v219
    %v221 = vand.u32 %v220, 4294901760
    %v222 = vsub.f32 %v220, %v221
    %v223 = vand.u32 %v222, 4294901760
    %224 = vmatprep.subr.mxu0 %v223
    %v225 = vand.u32 %v59, 4294901760
    %v226 = vsub.f32 %v59, %v225
    %v227 = vand.u32 %v226, 4294901760
    %v228 = vsub.f32 %v226, %v227
    %v229 = vand.u32 %v228, 4294901760
    %230 = vmatpush1.msra.mxu0 %v229
    %v231 = vand.u32 %v62, 4294901760
    %v232 = vsub.f32 %v62, %v231
    %v233 = vand.u32 %v232, 4294901760
    %v234 = vsub.f32 %v232, %v233
    %v235 = vand.u32 %v234, 4294901760
    %236 = vmatprep.subr.mxu0 %v235
    %v237 = vand.u32 %v61, 4294901760
    %v238 = vsub.f32 %v61, %v237
    %v239 = vand.u32 %v238, 4294901760
    %v240 = vsub.f32 %v238, %v239
    %v241 = vand.u32 %v240, 4294901760
    %242 = vmatpush1.msra.mxu0 %v241
    %v243 = vand.u32 %v64, 4294901760
    %v244 = vsub.f32 %v64, %v243
    %v245 = vand.u32 %v244, 4294901760
    %v246 = vsub.f32 %v244, %v245
    %v247 = vand.u32 %v246, 4294901760
    %248 = vmatprep.subr.mxu0 %v247
    %v249 = vand.u32 %v63, 4294901760
    %v250 = vsub.f32 %v63, %v249
    %v251 = vand.u32 %v250, 4294901760
    %v252 = vsub.f32 %v250, %v251
    %v253 = vand.u32 %v252, 4294901760
    %254 = vmatpush1.msra.mxu0 %v253
    %v255 = vand.u32 %v66, 4294901760
    %v256 = vsub.f32 %v66, %v255
    %v257 = vand.u32 %v256, 4294901760
    %v258 = vsub.f32 %v256, %v257
    %v259 = vand.u32 %v258, 4294901760
    %260 = vmatprep.subr.mxu0 %v259
    %v261 = vand.u32 %v65, 4294901760
    %v262 = vsub.f32 %v65, %v261
    %v263 = vand.u32 %v262, 4294901760
    %v264 = vsub.f32 %v262, %v263
    %v265 = vand.u32 %v264, 4294901760
    %266 = vmatpush1.msra.mxu0 %v265
    %v267 = vand.u32 %v68, 4294901760
    %v268 = vsub.f32 %v68, %v267
    %v269 = vand.u32 %v268, 4294901760
    %v270 = vsub.f32 %v268, %v269
    %v271 = vand.u32 %v270, 4294901760
    %272 = vmatprep.subr.mxu0 %v271
    %v273 = vand.u32 %v67, 4294901760
    %v274 = vsub.f32 %v67, %v273
    %v275 = vand.u32 %v274, 4294901760
    %v276 = vsub.f32 %v274, %v275
    %v277 = vand.u32 %v276, 4294901760
    %278 = vmatpush1.msra.mxu0 %v277
    %v279 = vand.u32 %v70, 4294901760
    %v280 = vsub.f32 %v70, %v279
    %v281 = vand.u32 %v280, 4294901760
    %v282 = vsub.f32 %v280, %v281
    %v283 = vand.u32 %v282, 4294901760
    %284 = vmatprep.subr.mxu0 %v283
    %v285 = vand.u32 %v69, 4294901760
    %v286 = vsub.f32 %v69, %v285
    %v287 = vand.u32 %v286, 4294901760
    %v288 = vsub.f32 %v286, %v287
    %v289 = vand.u32 %v288, 4294901760
    %290 = vmatpush1.msra.mxu0 %v289
    %v291 = vand.u32 %v72, 4294901760
    %v292 = vsub.f32 %v72, %v291
    %v293 = vand.u32 %v292, 4294901760
    %v294 = vsub.f32 %v292, %v293
    %v295 = vand.u32 %v294, 4294901760
    %296 = vmatprep.subr.mxu0 %v295
    %v297 = vand.u32 %v71, 4294901760
    %v298 = vsub.f32 %v71, %v297
    %v299 = vand.u32 %v298, 4294901760
    %v300 = vsub.f32 %v298, %v299
    %v301 = vand.u32 %v300, 4294901760
    %302 = vmatpush1.msra.mxu0 %v301
    %v303 = vand.u32 %v74, 4294901760
    %v304 = vsub.f32 %v74, %v303
    %v305 = vand.u32 %v304, 4294901760
    %v306 = vsub.f32 %v304, %v305
    %v307 = vand.u32 %v306, 4294901760
    %308 = vmatprep.subr.mxu0 %v307
    %v309 = vand.u32 %v73, 4294901760
    %v310 = vsub.f32 %v73, %v309
    %v311 = vand.u32 %v310, 4294901760
    %v312 = vsub.f32 %v310, %v311
    %v313 = vand.u32 %v312, 4294901760
    %314 = vmatpush1.msra.mxu0 %v313
    %v315 = vand.u32 %v76, 4294901760
    %v316 = vsub.f32 %v76, %v315
    %v317 = vand.u32 %v316, 4294901760
    %v318 = vsub.f32 %v316, %v317
    %v319 = vand.u32 %v318, 4294901760
    %320 = vmatprep.subr.mxu0 %v319
    %v321 = vand.u32 %v75, 4294901760
    %v322 = vsub.f32 %v75, %v321
    %v323 = vand.u32 %v322, 4294901760
    %v324 = vsub.f32 %v322, %v323
    %v325 = vand.u32 %v324, 4294901760
    %326 = vmatpush1.msra.mxu0 %v325
    %v327 = vand.u32 %v78, 4294901760
    %v328 = vsub.f32 %v78, %v327
    %v329 = vand.u32 %v328, 4294901760
    %v330 = vsub.f32 %v328, %v329
    %v331 = vand.u32 %v330, 4294901760
    %332 = vmatprep.subr.mxu0 %v331
    %v333 = vand.u32 %v77, 4294901760
    %v334 = vsub.f32 %v77, %v333
    %v335 = vand.u32 %v334, 4294901760
    %v336 = vsub.f32 %v334, %v335
    %v337 = vand.u32 %v336, 4294901760
    %338 = vmatpush1.msra.mxu0 %v337
    %v339 = vand.u32 %v80, 4294901760
    %v340 = vsub.f32 %v80, %v339
    %v341 = vand.u32 %v340, 4294901760
    %v342 = vsub.f32 %v340, %v341
    %v343 = vand.u32 %v342, 4294901760
    %344 = vmatprep.subr.mxu0 %v343
    %v345 = vand.u32 %v79, 4294901760
    %v346 = vsub.f32 %v79, %v345
    %v347 = vand.u32 %v346, 4294901760
    %v348 = vsub.f32 %v346, %v347
    %v349 = vand.u32 %v348, 4294901760
    %350 = vmatpush1.msra.mxu0 %v349
    %v351 = vand.u32 %v82, 4294901760
    %v352 = vsub.f32 %v82, %v351
    %v353 = vand.u32 %v352, 4294901760
    %v354 = vsub.f32 %v352, %v353
    %v355 = vand.u32 %v354, 4294901760
    %356 = vmatprep.subr.mxu0 %v355
    %v357 = vand.u32 %v81, 4294901760
    %v358 = vsub.f32 %v81, %v357
    %v359 = vand.u32 %v358, 4294901760
    %v360 = vsub.f32 %v358, %v359
    %v361 = vand.u32 %v360, 4294901760
    %362 = vmatpush1.msra.mxu0 %v361
    %v363 = vand.u32 %v84, 4294901760
    %v364 = vsub.f32 %v84, %v363
    %v365 = vand.u32 %v364, 4294901760
    %v366 = vsub.f32 %v364, %v365
    %v367 = vand.u32 %v366, 4294901760
    %368 = vmatprep.subr.mxu0 %v367
    %v369 = vand.u32 %v83, 4294901760
    %v370 = vsub.f32 %v83, %v369
    %v371 = vand.u32 %v370, 4294901760
    %v372 = vsub.f32 %v370, %v371
    %v373 = vand.u32 %v372, 4294901760
    %374 = vmatpush1.msra.mxu0 %v373
    %v375 = vand.u32 %v86, 4294901760
    %v376 = vsub.f32 %v86, %v375
    %v377 = vand.u32 %v376, 4294901760
    %v378 = vsub.f32 %v376, %v377
    %v379 = vand.u32 %v378, 4294901760
    %380 = vmatprep.subr.mxu0 %v379
    %v381 = vand.u32 %v85, 4294901760
    %v382 = vsub.f32 %v85, %v381
    %v383 = vand.u32 %v382, 4294901760
    %v384 = vsub.f32 %v382, %v383
    %v385 = vand.u32 %v384, 4294901760
    %386 = vmatpush1.msra.mxu0 %v385
    %387 = vmatprep.subr.mxu0 0.0
    %388 = vmatpush1.msra.mxu0 0.0
    %389 = vmatprep.subr.mxu0 0.0
    %390 = vmatpush1.msra.mxu0 0.0
    %391 = vmatprep.subr.mxu0 0.0
    %392 = vmatpush1.msra.mxu0 0.0
    %393 = vmatprep.subr.mxu0 0.0
    %394 = vmatpush1.msra.mxu0 0.0
    %395 = vmatprep.subr.mxu0 0.0
    %396 = vmatpush1.msra.mxu0 0.0
    %397 = vmatprep.subr.mxu0 0.0
    %398 = vmatpush1.msra.mxu0 0.0
    %399 = vmatprep.subr.mxu0 0.0
    %400 = vmatpush1.msra.mxu0 0.0
    %401 = vmatprep.subr.mxu0 0.0
    %402 = vmatpush1.msra.mxu0 0.0
    %403 = vmatprep.subr.mxu0 0.0
    %404 = vmatpush1.msra.mxu0 0.0
    %405 = vmatprep.subr.mxu0 0.0
    %406 = vmatpush1.msra.mxu0 0.0
    %407 = vmatprep.subr.mxu0 0.0
    %408 = vmatpush1.msra.mxu0 0.0
    %409 = vmatprep.subr.mxu0 0.0
    %410 = vmatpush1.msra.mxu0 0.0
    %411 = vmatprep.subr.mxu0 0.0
    %412 = vmatpush1.msra.mxu0 0.0
    %413 = vmatprep.subr.mxu0 0.0
    %414 = vmatpush1.msra.mxu0 0.0
    %415 = vmatprep.subr.mxu0 0.0
    %416 = vmatpush1.msra.mxu0 0.0
    %417 = vmatprep.subr.mxu0 0.0
    %418 = vmatpush1.msra.mxu0 0.0
    %419 = vmatprep.mubr.f32.mxu0 0.0
    %v420 = vand.u32 %v54, 4294901760
    %421 = vmatmul.mubr.f32.gmra.mrb[0].mxu0 %v420
    %v422 = vpop.f32.mrb[0].mxu0
    %v423 = vadd.f32 %v191, %v422
    %v424 = vpop.f32.mrb[0].mxu0
    %v425 = vadd.f32 %v193, %v424
    %426 = vdwg.mxu0
    %v427 = vand.u32 %v56, 4294901760
    %v428 = vsub.f32 %v56, %v427
    %429 = vmatprep.subr.mxu0 %v428
    %v430 = vand.u32 %v55, 4294901760
    %v431 = vsub.f32 %v55, %v430
    %432 = vmatpush1.msra.mxu0 %v431
    %v433 = vand.u32 %v58, 4294901760
    %v434 = vsub.f32 %v58, %v433
    %435 = vmatprep.subr.mxu0 %v434
    %v436 = vand.u32 %v57, 4294901760
    %v437 = vsub.f32 %v57, %v436
    %438 = vmatpush1.msra.mxu0 %v437
    %v439 = vand.u32 %v60, 4294901760
    %v440 = vsub.f32 %v60, %v439
    %441 = vmatprep.subr.mxu0 %v440
    %v442 = vand.u32 %v59, 4294901760
    %v443 = vsub.f32 %v59, %v442
    %444 = vmatpush1.msra.mxu0 %v443
    %v445 = vand.u32 %v62, 4294901760
    %v446 = vsub.f32 %v62, %v445
    %447 = vmatprep.subr.mxu0 %v446
    %v448 = vand.u32 %v61, 4294901760
    %v449 = vsub.f32 %v61, %v448
    %450 = vmatpush1.msra.mxu0 %v449
    %v451 = vand.u32 %v64, 4294901760
    %v452 = vsub.f32 %v64, %v451
    %453 = vmatprep.subr.mxu0 %v452
    %v454 = vand.u32 %v63, 4294901760
    %v455 = vsub.f32 %v63, %v454
    %456 = vmatpush1.msra.mxu0 %v455
    %v457 = vand.u32 %v66, 4294901760
    %v458 = vsub.f32 %v66, %v457
    %459 = vmatprep.subr.mxu0 %v458
    %v460 = vand.u32 %v65, 4294901760
    %v461 = vsub.f32 %v65, %v460
    %462 = vmatpush1.msra.mxu0 %v461
    %v463 = vand.u32 %v68, 4294901760
    %v464 = vsub.f32 %v68, %v463
    %465 = vmatprep.subr.mxu0 %v464
    %v466 = vand.u32 %v67, 4294901760
    %v467 = vsub.f32 %v67, %v466
    %468 = vmatpush1.msra.mxu0 %v467
    %v469 = vand.u32 %v70, 4294901760
    %v470 = vsub.f32 %v70, %v469
    %471 = vmatprep.subr.mxu0 %v470
    %v472 = vand.u32 %v69, 4294901760
    %v473 = vsub.f32 %v69, %v472
    %474 = vmatpush1.msra.mxu0 %v473
    %v475 = vand.u32 %v72, 4294901760
    %v476 = vsub.f32 %v72, %v475
    %477 = vmatprep.subr.mxu0 %v476
    %v478 = vand.u32 %v71, 4294901760
    %v479 = vsub.f32 %v71, %v478
    %480 = vmatpush1.msra.mxu0 %v479
    %v481 = vand.u32 %v74, 4294901760
    %v482 = vsub.f32 %v74, %v481
    %483 = vmatprep.subr.mxu0 %v482
    %v484 = vand.u32 %v73, 4294901760
    %v485 = vsub.f32 %v73, %v484
    %486 = vmatpush1.msra.mxu0 %v485
    %v487 = vand.u32 %v76, 4294901760
    %v488 = vsub.f32 %v76, %v487
    %489 = vmatprep.subr.mxu0 %v488
    %v490 = vand.u32 %v75, 4294901760
    %v491 = vsub.f32 %v75, %v490
    %492 = vmatpush1.msra.mxu0 %v491
    %v493 = vand.u32 %v78, 4294901760
    %v494 = vsub.f32 %v78, %v493
    %495 = vmatprep.subr.mxu0 %v494
    %v496 = vand.u32 %v77, 4294901760
    %v497 = vsub.f32 %v77, %v496
    %498 = vmatpush1.msra.mxu0 %v497
    %v499 = vand.u32 %v80, 4294901760
    %v500 = vsub.f32 %v80, %v499
    %501 = vmatprep.subr.mxu0 %v500
    %v502 = vand.u32 %v79, 4294901760
    %v503 = vsub.f32 %v79, %v502
    %504 = vmatpush1.msra.mxu0 %v503
    %v505 = vand.u32 %v82, 4294901760
    %v506 = vsub.f32 %v82, %v505
    %507 = vmatprep.subr.mxu0 %v506
    %v508 = vand.u32 %v81, 4294901760
    %v509 = vsub.f32 %v81, %v508
    %510 = vmatpush1.msra.mxu0 %v509
    %v511 = vand.u32 %v84, 4294901760
    %v512 = vsub.f32 %v84, %v511
    %513 = vmatprep.subr.mxu0 %v512
    %v514 = vand.u32 %v83, 4294901760
    %v515 = vsub.f32 %v83, %v514
    %516 = vmatpush1.msra.mxu0 %v515
    %v517 = vand.u32 %v86, 4294901760
    %v518 = vsub.f32 %v86, %v517
    %519 = vmatprep.subr.mxu0 %v518
    %v520 = vand.u32 %v85, 4294901760
    %v521 = vsub.f32 %v85, %v520
    %522 = vmatpush1.msra.mxu0 %v521
    %523 = vmatprep.subr.mxu0 0.0
    %524 = vmatpush1.msra.mxu0 0.0
    %525 = vmatprep.subr.mxu0 0.0
    %526 = vmatpush1.msra.mxu0 0.0
    %527 = vmatprep.subr.mxu0 0.0
    %528 = vmatpush1.msra.mxu0 0.0
    %529 = vmatprep.subr.mxu0 0.0
    %530 = vmatpush1.msra.mxu0 0.0
    %531 = vmatprep.subr.mxu0 0.0
    %532 = vmatpush1.msra.mxu0 0.0
    %533 = vmatprep.subr.mxu0 0.0
    %534 = vmatpush1.msra.mxu0 0.0
    %535 = vmatprep.subr.mxu0 0.0
    %536 = vmatpush1.msra.mxu0 0.0
    %537 = vmatprep.subr.mxu0 0.0
    %538 = vmatpush1.msra.mxu0 0.0
    %539 = vmatprep.subr.mxu0 0.0
    %540 = vmatpush1.msra.mxu0 0.0
    %541 = vmatprep.subr.mxu0 0.0
    %542 = vmatpush1.msra.mxu0 0.0
    %543 = vmatprep.subr.mxu0 0.0
    %544 = vmatpush1.msra.mxu0 0.0
    %545 = vmatprep.subr.mxu0 0.0
    %546 = vmatpush1.msra.mxu0 0.0
    %547 = vmatprep.subr.mxu0 0.0
    %548 = vmatpush1.msra.mxu0 0.0
    %549 = vmatprep.subr.mxu0 0.0
    %550 = vmatpush1.msra.mxu0 0.0
    %551 = vmatprep.subr.mxu0 0.0
    %552 = vmatpush1.msra.mxu0 0.0
    %553 = vmatprep.subr.mxu0 0.0
    %554 = vmatpush1.msra.mxu0 0.0
    %555 = vmatprep.mubr.f32.mxu0 0.0
    %v556 = vand.u32 %v54, 4294901760
    %v557 = vsub.f32 %v54, %v556
    %558 = vmatmul.mubr.f32.gmra.mrb[0].mxu0 %v557
    %v559 = vpop.f32.mrb[0].mxu0
    %v560 = vadd.f32 %v423, %v559
    %v561 = vpop.f32.mrb[0].mxu0
    %v562 = vadd.f32 %v425, %v561
    %563 = vdwg.mxu0
    %v564 = vand.u32 %v56, 4294901760
    %565 = vmatprep.subr.mxu0 %v564
    %v566 = vand.u32 %v55, 4294901760
    %567 = vmatpush1.msra.mxu0 %v566
    %v568 = vand.u32 %v58, 4294901760
    %569 = vmatprep.subr.mxu0 %v568
    %v570 = vand.u32 %v57, 4294901760
    %571 = vmatpush1.msra.mxu0 %v570
    %v572 = vand.u32 %v60, 4294901760
    %573 = vmatprep.subr.mxu0 %v572
    %v574 = vand.u32 %v59, 4294901760
    %575 = vmatpush1.msra.mxu0 %v574
    %v576 = vand.u32 %v62, 4294901760
    %577 = vmatprep.subr.mxu0 %v576
    %v578 = vand.u32 %v61, 4294901760
    %579 = vmatpush1.msra.mxu0 %v578
    %v580 = vand.u32 %v64, 4294901760
    %581 = vmatprep.subr.mxu0 %v580
    %v582 = vand.u32 %v63, 4294901760
    %583 = vmatpush1.msra.mxu0 %v582
    %v584 = vand.u32 %v66, 4294901760
    %585 = vmatprep.subr.mxu0 %v584
    %v586 = vand.u32 %v65, 4294901760
    %587 = vmatpush1.msra.mxu0 %v586
    %v588 = vand.u32 %v68, 4294901760
    %589 = vmatprep.subr.mxu0 %v588
    %v590 = vand.u32 %v67, 4294901760
    %591 = vmatpush1.msra.mxu0 %v590
    %v592 = vand.u32 %v70, 4294901760
    %593 = vmatprep.subr.mxu0 %v592
    %v594 = vand.u32 %v69, 4294901760
    %595 = vmatpush1.msra.mxu0 %v594
    %v596 = vand.u32 %v72, 4294901760
    %597 = vmatprep.subr.mxu0 %v596
    %v598 = vand.u32 %v71, 4294901760
    %599 = vmatpush1.msra.mxu0 %v598
    %v600 = vand.u32 %v74, 4294901760
    %601 = vmatprep.subr.mxu0 %v600
    %v602 = vand.u32 %v73, 4294901760
    %603 = vmatpush1.msra.mxu0 %v602
    %v604 = vand.u32 %v76, 4294901760
    %605 = vmatprep.subr.mxu0 %v604
    %v606 = vand.u32 %v75, 4294901760
    %607 = vmatpush1.msra.mxu0 %v606
    %v608 = vand.u32 %v78, 4294901760
    %609 = vmatprep.subr.mxu0 %v608
    %v610 = vand.u32 %v77, 4294901760
    %611 = vmatpush1.msra.mxu0 %v610
    %v612 = vand.u32 %v80, 4294901760
    %613 = vmatprep.subr.mxu0 %v612
    %v614 = vand.u32 %v79, 4294901760
    %615 = vmatpush1.msra.mxu0 %v614
    %v616 = vand.u32 %v82, 4294901760
    %617 = vmatprep.subr.mxu0 %v616
    %v618 = vand.u32 %v81, 4294901760
    %619 = vmatpush1.msra.mxu0 %v618
    %v620 = vand.u32 %v84, 4294901760
    %621 = vmatprep.subr.mxu0 %v620
    %v622 = vand.u32 %v83, 4294901760
    %623 = vmatpush1.msra.mxu0 %v622
    %v624 = vand.u32 %v86, 4294901760
    %625 = vmatprep.subr.mxu0 %v624
    %v626 = vand.u32 %v85, 4294901760
    %627 = vmatpush1.msra.mxu0 %v626
    %628 = vmatprep.subr.mxu0 0.0
    %629 = vmatpush1.msra.mxu0 0.0
    %630 = vmatprep.subr.mxu0 0.0
    %631 = vmatpush1.msra.mxu0 0.0
    %632 = vmatprep.subr.mxu0 0.0
    %633 = vmatpush1.msra.mxu0 0.0
    %634 = vmatprep.subr.mxu0 0.0
    %635 = vmatpush1.msra.mxu0 0.0
    %636 = vmatprep.subr.mxu0 0.0
    %637 = vmatpush1.msra.mxu0 0.0
    %638 = vmatprep.subr.mxu0 0.0
    %639 = vmatpush1.msra.mxu0 0.0
    %640 = vmatprep.subr.mxu0 0.0
    %641 = vmatpush1.msra.mxu0 0.0
    %642 = vmatprep.subr.mxu0 0.0
    %643 = vmatpush1.msra.mxu0 0.0
    %644 = vmatprep.subr.mxu0 0.0
    %645 = vmatpush1.msra.mxu0 0.0
    %646 = vmatprep.subr.mxu0 0.0
    %647 = vmatpush1.msra.mxu0 0.0
    %648 = vmatprep.subr.mxu0 0.0
    %649 = vmatpush1.msra.mxu0 0.0
    %650 = vmatprep.subr.mxu0 0.0
    %651 = vmatpush1.msra.mxu0 0.0
    %652 = vmatprep.subr.mxu0 0.0
    %653 = vmatpush1.msra.mxu0 0.0
    %654 = vmatprep.subr.mxu0 0.0
    %655 = vmatpush1.msra.mxu0 0.0
    %656 = vmatprep.subr.mxu0 0.0
    %657 = vmatpush1.msra.mxu0 0.0
    %658 = vmatprep.subr.mxu0 0.0
    %659 = vmatpush1.msra.mxu0 0.0
    %660 = vmatprep.mubr.f32.mxu0 0.0
    %v661 = vand.u32 %v54, 4294901760
    %v662 = vsub.f32 %v54, %v661
    %v663 = vand.u32 %v662, 4294901760
    %664 = vmatmul.mubr.f32.gmra.mrb[0].mxu0 %v663
    %v665 = vpop.f32.mrb[0].mxu0
    %v666 = vadd.f32 %v560, %v665
    %v667 = vpop.f32.mrb[0].mxu0
    %v668 = vadd.f32 %v562, %v667
    %669 = vdwg.mxu0
    %v670 = vand.u32 %v56, 4294901760
    %v671 = vsub.f32 %v56, %v670
    %v672 = vand.u32 %v671, 4294901760
    %673 = vmatprep.subr.mxu0 %v672
    %v674 = vand.u32 %v55, 4294901760
    %v675 = vsub.f32 %v55, %v674
    %v676 = vand.u32 %v675, 4294901760
    %677 = vmatpush1.msra.mxu0 %v676
    %v678 = vand.u32 %v58, 4294901760
    %v679 = vsub.f32 %v58, %v678
    %v680 = vand.u32 %v679, 4294901760
    %681 = vmatprep.subr.mxu0 %v680
    %v682 = vand.u32 %v57, 4294901760
    %v683 = vsub.f32 %v57, %v682
    %v684 = vand.u32 %v683, 4294901760
    %685 = vmatpush1.msra.mxu0 %v684
    %v686 = vand.u32 %v60, 4294901760
    %v687 = vsub.f32 %v60, %v686
    %v688 = vand.u32 %v687, 4294901760
    %689 = vmatprep.subr.mxu0 %v688
    %v690 = vand.u32 %v59, 4294901760
    %v691 = vsub.f32 %v59, %v690
    %v692 = vand.u32 %v691, 4294901760
    %693 = vmatpush1.msra.mxu0 %v692
    %v694 = vand.u32 %v62, 4294901760
    %v695 = vsub.f32 %v62, %v694
    %v696 = vand.u32 %v695, 4294901760
    %697 = vmatprep.subr.mxu0 %v696
    %v698 = vand.u32 %v61, 4294901760
    %v699 = vsub.f32 %v61, %v698
    %v700 = vand.u32 %v699, 4294901760
    %701 = vmatpush1.msra.mxu0 %v700
    %v702 = vand.u32 %v64, 4294901760
    %v703 = vsub.f32 %v64, %v702
    %v704 = vand.u32 %v703, 4294901760
    %705 = vmatprep.subr.mxu0 %v704
    %v706 = vand.u32 %v63, 4294901760
    %v707 = vsub.f32 %v63, %v706
    %v708 = vand.u32 %v707, 4294901760
    %709 = vmatpush1.msra.mxu0 %v708
    %v710 = vand.u32 %v66, 4294901760
    %v711 = vsub.f32 %v66, %v710
    %v712 = vand.u32 %v711, 4294901760
    %713 = vmatprep.subr.mxu0 %v712
    %v714 = vand.u32 %v65, 4294901760
    %v715 = vsub.f32 %v65, %v714
    %v716 = vand.u32 %v715, 4294901760
    %717 = vmatpush1.msra.mxu0 %v716
    %v718 = vand.u32 %v68, 4294901760
    %v719 = vsub.f32 %v68, %v718
    %v720 = vand.u32 %v719, 4294901760
    %721 = vmatprep.subr.mxu0 %v720
    %v722 = vand.u32 %v67, 4294901760
    %v723 = vsub.f32 %v67, %v722
    %v724 = vand.u32 %v723, 4294901760
    %725 = vmatpush1.msra.mxu0 %v724
    %v726 = vand.u32 %v70, 4294901760
    %v727 = vsub.f32 %v70, %v726
    %v728 = vand.u32 %v727, 4294901760
    %729 = vmatprep.subr.mxu0 %v728
    %v730 = vand.u32 %v69, 4294901760
    %v731 = vsub.f32 %v69, %v730
    %v732 = vand.u32 %v731, 4294901760
    %733 = vmatpush1.msra.mxu0 %v732
    %v734 = vand.u32 %v72, 4294901760
    %v735 = vsub.f32 %v72, %v734
    %v736 = vand.u32 %v735, 4294901760
    %737 = vmatprep.subr.mxu0 %v736
    %v738 = vand.u32 %v71, 4294901760
    %v739 = vsub.f32 %v71, %v738
    %v740 = vand.u32 %v739, 4294901760
    %741 = vmatpush1.msra.mxu0 %v740
    %v742 = vand.u32 %v74, 4294901760
    %v743 = vsub.f32 %v74, %v742
    %v744 = vand.u32 %v743, 4294901760
    %745 = vmatprep.subr.mxu0 %v744
    %v746 = vand.u32 %v73, 4294901760
    %v747 = vsub.f32 %v73, %v746
    %v748 = vand.u32 %v747, 4294901760
    %749 = vmatpush1.msra.mxu0 %v748
    %v750 = vand.u32 %v76, 4294901760
    %v751 = vsub.f32 %v76, %v750
    %v752 = vand.u32 %v751, 4294901760
    %753 = vmatprep.subr.mxu0 %v752
    %v754 = vand.u32 %v75, 4294901760
    %v755 = vsub.f32 %v75, %v754
    %v756 = vand.u32 %v755, 4294901760
    %757 = vmatpush1.msra.mxu0 %v756
    %v758 = vand.u32 %v78, 4294901760
    %v759 = vsub.f32 %v78, %v758
    %v760 = vand.u32 %v759, 4294901760
    %761 = vmatprep.subr.mxu0 %v760
    %v762 = vand.u32 %v77, 4294901760
    %v763 = vsub.f32 %v77, %v762
    %v764 = vand.u32 %v763, 4294901760
    %765 = vmatpush1.msra.mxu0 %v764
    %v766 = vand.u32 %v80, 4294901760
    %v767 = vsub.f32 %v80, %v766
    %v768 = vand.u32 %v767, 4294901760
    %769 = vmatprep.subr.mxu0 %v768
    %v770 = vand.u32 %v79, 4294901760
    %v771 = vsub.f32 %v79, %v770
    %v772 = vand.u32 %v771, 4294901760
    %773 = vmatpush1.msra.mxu0 %v772
    %v774 = vand.u32 %v82, 4294901760
    %v775 = vsub.f32 %v82, %v774
    %v776 = vand.u32 %v775, 4294901760
    %777 = vmatprep.subr.mxu0 %v776
    %v778 = vand.u32 %v81, 4294901760
    %v779 = vsub.f32 %v81, %v778
    %v780 = vand.u32 %v779, 4294901760
    %781 = vmatpush1.msra.mxu0 %v780
    %v782 = vand.u32 %v84, 4294901760
    %v783 = vsub.f32 %v84, %v782
    %v784 = vand.u32 %v783, 4294901760
    %785 = vmatprep.subr.mxu0 %v784
    %v786 = vand.u32 %v83, 4294901760
    %v787 = vsub.f32 %v83, %v786
    %v788 = vand.u32 %v787, 4294901760
    %789 = vmatpush1.msra.mxu0 %v788
    %v790 = vand.u32 %v86, 4294901760
    %v791 = vsub.f32 %v86, %v790
    %v792 = vand.u32 %v791, 4294901760
    %793 = vmatprep.subr.mxu0 %v792
    %v794 = vand.u32 %v85, 4294901760
    %v795 = vsub.f32 %v85, %v794
    %v796 = vand.u32 %v795, 4294901760
    %797 = vmatpush1.msra.mxu0 %v796
    %798 = vmatprep.subr.mxu0 0.0
    %799 = vmatpush1.msra.mxu0 0.0
    %800 = vmatprep.subr.mxu0 0.0
    %801 = vmatpush1.msra.mxu0 0.0
    %802 = vmatprep.subr.mxu0 0.0
    %803 = vmatpush1.msra.mxu0 0.0
    %804 = vmatprep.subr.mxu0 0.0
    %805 = vmatpush1.msra.mxu0 0.0
    %806 = vmatprep.subr.mxu0 0.0
    %807 = vmatpush1.msra.mxu0 0.0
    %808 = vmatprep.subr.mxu0 0.0
    %809 = vmatpush1.msra.mxu0 0.0
    %810 = vmatprep.subr.mxu0 0.0
    %811 = vmatpush1.msra.mxu0 0.0
    %812 = vmatprep.subr.mxu0 0.0
    %813 = vmatpush1.msra.mxu0 0.0
    %814 = vmatprep.subr.mxu0 0.0
    %815 = vmatpush1.msra.mxu0 0.0
    %816 = vmatprep.subr.mxu0 0.0
    %817 = vmatpush1.msra.mxu0 0.0
    %818 = vmatprep.subr.mxu0 0.0
    %819 = vmatpush1.msra.mxu0 0.0
    %820 = vmatprep.subr.mxu0 0.0
    %821 = vmatpush1.msra.mxu0 0.0
    %822 = vmatprep.subr.mxu0 0.0
    %823 = vmatpush1.msra.mxu0 0.0
    %824 = vmatprep.subr.mxu0 0.0
    %825 = vmatpush1.msra.mxu0 0.0
    %826 = vmatprep.subr.mxu0 0.0
    %827 = vmatpush1.msra.mxu0 0.0
    %828 = vmatprep.subr.mxu0 0.0
    %829 = vmatpush1.msra.mxu0 0.0
    %830 = vmatprep.mubr.f32.mxu0 0.0
    %v831 = vand.u32 %v54, 4294901760
    %832 = vmatmul.mubr.f32.gmra.mrb[0].mxu0 %v831
    %v833 = vpop.f32.mrb[0].mxu0
    %v834 = vadd.f32 %v666, %v833
    %v835 = vpop.f32.mrb[0].mxu0
    %v836 = vadd.f32 %v668, %v835
    %837 = vdwg.mxu0
    %v838 = vand.u32 %v56, 4294901760
    %839 = vmatprep.subr.mxu0 %v838
    %v840 = vand.u32 %v55, 4294901760
    %841 = vmatpush1.msra.mxu0 %v840
    %v842 = vand.u32 %v58, 4294901760
    %843 = vmatprep.subr.mxu0 %v842
    %v844 = vand.u32 %v57, 4294901760
    %845 = vmatpush1.msra.mxu0 %v844
    %v846 = vand.u32 %v60, 4294901760
    %847 = vmatprep.subr.mxu0 %v846
    %v848 = vand.u32 %v59, 4294901760
    %849 = vmatpush1.msra.mxu0 %v848
    %v850 = vand.u32 %v62, 4294901760
    %851 = vmatprep.subr.mxu0 %v850
    %v852 = vand.u32 %v61, 4294901760
    %853 = vmatpush1.msra.mxu0 %v852
    %v854 = vand.u32 %v64, 4294901760
    %855 = vmatprep.subr.mxu0 %v854
    %v856 = vand.u32 %v63, 4294901760
    %857 = vmatpush1.msra.mxu0 %v856
    %v858 = vand.u32 %v66, 4294901760
    %859 = vmatprep.subr.mxu0 %v858
    %v860 = vand.u32 %v65, 4294901760
    %861 = vmatpush1.msra.mxu0 %v860
    %v862 = vand.u32 %v68, 4294901760
    %863 = vmatprep.subr.mxu0 %v862
    %v864 = vand.u32 %v67, 4294901760
    %865 = vmatpush1.msra.mxu0 %v864
    %v866 = vand.u32 %v70, 4294901760
    %867 = vmatprep.subr.mxu0 %v866
    %v868 = vand.u32 %v69, 4294901760
    %869 = vmatpush1.msra.mxu0 %v868
    %v870 = vand.u32 %v72, 4294901760
    %871 = vmatprep.subr.mxu0 %v870
    %v872 = vand.u32 %v71, 4294901760
    %873 = vmatpush1.msra.mxu0 %v872
    %v874 = vand.u32 %v74, 4294901760
    %875 = vmatprep.subr.mxu0 %v874
    %v876 = vand.u32 %v73, 4294901760
    %877 = vmatpush1.msra.mxu0 %v876
    %v878 = vand.u32 %v76, 4294901760
    %879 = vmatprep.subr.mxu0 %v878
    %v880 = vand.u32 %v75, 4294901760
    %881 = vmatpush1.msra.mxu0 %v880
    %v882 = vand.u32 %v78, 4294901760
    %883 = vmatprep.subr.mxu0 %v882
    %v884 = vand.u32 %v77, 4294901760
    %885 = vmatpush1.msra.mxu0 %v884
    %v886 = vand.u32 %v80, 4294901760
    %887 = vmatprep.subr.mxu0 %v886
    %v888 = vand.u32 %v79, 4294901760
    %889 = vmatpush1.msra.mxu0 %v888
    %v890 = vand.u32 %v82, 4294901760
    %891 = vmatprep.subr.mxu0 %v890
    %v892 = vand.u32 %v81, 4294901760
    %893 = vmatpush1.msra.mxu0 %v892
    %v894 = vand.u32 %v84, 4294901760
    %895 = vmatprep.subr.mxu0 %v894
    %v896 = vand.u32 %v83, 4294901760
    %897 = vmatpush1.msra.mxu0 %v896
    %v898 = vand.u32 %v86, 4294901760
    %899 = vmatprep.subr.mxu0 %v898
    %v900 = vand.u32 %v85, 4294901760
    %901 = vmatpush1.msra.mxu0 %v900
    %902 = vmatprep.subr.mxu0 0.0
    %903 = vmatpush1.msra.mxu0 0.0
    %904 = vmatprep.subr.mxu0 0.0
    %905 = vmatpush1.msra.mxu0 0.0
    %906 = vmatprep.subr.mxu0 0.0
    %907 = vmatpush1.msra.mxu0 0.0
    %908 = vmatprep.subr.mxu0 0.0
    %909 = vmatpush1.msra.mxu0 0.0
    %910 = vmatprep.subr.mxu0 0.0
    %911 = vmatpush1.msra.mxu0 0.0
    %912 = vmatprep.subr.mxu0 0.0
    %913 = vmatpush1.msra.mxu0 0.0
    %914 = vmatprep.subr.mxu0 0.0
    %915 = vmatpush1.msra.mxu0 0.0
    %916 = vmatprep.subr.mxu0 0.0
    %917 = vmatpush1.msra.mxu0 0.0
    %918 = vmatprep.subr.mxu0 0.0
    %919 = vmatpush1.msra.mxu0 0.0
    %920 = vmatprep.subr.mxu0 0.0
    %921 = vmatpush1.msra.mxu0 0.0
    %922 = vmatprep.subr.mxu0 0.0
    %923 = vmatpush1.msra.mxu0 0.0
    %924 = vmatprep.subr.mxu0 0.0
    %925 = vmatpush1.msra.mxu0 0.0
    %926 = vmatprep.subr.mxu0 0.0
    %927 = vmatpush1.msra.mxu0 0.0
    %928 = vmatprep.subr.mxu0 0.0
    %929 = vmatpush1.msra.mxu0 0.0
    %930 = vmatprep.subr.mxu0 0.0
    %931 = vmatpush1.msra.mxu0 0.0
    %932 = vmatprep.subr.mxu0 0.0
    %933 = vmatpush1.msra.mxu0 0.0
    %934 = vmatprep.mubr.f32.mxu0 0.0
    %v935 = vand.u32 %v54, 4294901760
    %936 = vmatmul.mubr.f32.gmra.mrb[0].mxu0 %v935
    %v937 = vpop.f32.mrb[0].mxu0
    %v938 = vadd.f32 %v834, %v937
    %v939 = vpop.f32.mrb[0].mxu0
    %v940 = vadd.f32 %v836, %v939
    %941 = vdwg.mxu0
    %v942 = vmul.f32 %v938, 0.5
    %v943 = vtanh.pop %v942
    %v944 = vadd.f32 %v943, 1.0
    %v945 = vmul.f32 %v944, 0.5
    %v946 = vld [vmem:[#allocation7] sm:$0xff]
    %v947 = vld [vmem:[#allocation7 + $0x8] sm:$0xff]
    %v948 = vld [vmem:[#allocation7 + $0x10] sm:$0xff]
    %v949 = vld [vmem:[#allocation7 + $0x18] sm:$0xff]
    %v950 = vld [vmem:[#allocation7 + $0x20] sm:$0xff]
    %v951 = vld [vmem:[#allocation7 + $0x28] sm:$0xff]
    %v952 = vld [vmem:[#allocation7 + $0x30] sm:$0xff]
    %v953 = vld [vmem:[#allocation7 + $0x38] sm:$0xff]
    %v954 = vld [vmem:[#allocation7 + $0x40] sm:$0xff]
    %v955 = vld [vmem:[#allocation7 + $0x48] sm:$0xff]
    %v956 = vld [vmem:[#allocation7 + $0x50] sm:$0xff]
    %v957 = vld [vmem:[#allocation7 + $0x58] sm:$0xff]
    %v958 = vld [vmem:[#allocation7 + $0x60] sm:$0xff]
    %v959 = vld [vmem:[#allocation7 + $0x68] sm:$0xff]
    %v960 = vld [vmem:[#allocation7 + $0x70] sm:$0xff]
    %v961 = vld [vmem:[#allocation7 + $0x78] sm:$0xff]
    %962 = vmatprep.subr.mxu0 0.0
    %v963 = vand.u32 %v946, 4294901760
    %964 = vmatpush1.msra.mxu0 %v963
    %965 = vmatprep.subr.mxu0 0.0
    %v966 = vand.u32 %v947, 4294901760
    %967 = vmatpush1.msra.mxu0 %v966
    %968 = vmatprep.subr.mxu0 0.0
    %v969 = vand.u32 %v948, 4294901760
    %970 = vmatpush1.msra.mxu0 %v969
    %971 = vmatprep.subr.mxu0 0.0
    %v972 = vand.u32 %v949, 4294901760
    %973 = vmatpush1.msra.mxu0 %v972
    %974 = vmatprep.subr.mxu0 0.0
    %v975 = vand.u32 %v950, 4294901760
    %976 = vmatpush1.msra.mxu0 %v975
    %977 = vmatprep.subr.mxu0 0.0
    %v978 = vand.u32 %v951, 4294901760
    %979 = vmatpush1.msra.mxu0 %v978
    %980 = vmatprep.subr.mxu0 0.0
    %v981 = vand.u32 %v952, 4294901760
    %982 = vmatpush1.msra.mxu0 %v981
    %983 = vmatprep.subr.mxu0 0.0
    %v984 = vand.u32 %v953, 4294901760
    %985 = vmatpush1.msra.mxu0 %v984
    %986 = vmatprep.subr.mxu0 0.0
    %v987 = vand.u32 %v954, 4294901760
    %988 = vmatpush1.msra.mxu0 %v987
    %989 = vmatprep.subr.mxu0 0.0
    %v990 = vand.u32 %v955, 4294901760
    %991 = vmatpush1.msra.mxu0 %v990
    %992 = vmatprep.subr.mxu0 0.0
    %v993 = vand.u32 %v956, 4294901760
    %994 = vmatpush1.msra.mxu0 %v993
    %995 = vmatprep.subr.mxu0 0.0
    %v996 = vand.u32 %v957, 4294901760
    %997 = vmatpush1.msra.mxu0 %v996
    %998 = vmatprep.subr.mxu0 0.0
    %v999 = vand.u32 %v958, 4294901760
    %1000 = vmatpush1.msra.mxu0 %v999
    %1001 = vmatprep.subr.mxu0 0.0
    %v1002 = vand.u32 %v959, 4294901760
    %1003 = vmatpush1.msra.mxu0 %v1002
    %1004 = vmatprep.subr.mxu0 0.0
    %v1005 = vand.u32 %v960, 4294901760
    %1006 = vmatpush1.msra.mxu0 %v1005
    %1007 = vmatprep.subr.mxu0 0.0
    %v1008 = vand.u32 %v961, 4294901760
    %1009 = vmatpush1.msra.mxu0 %v1008
    %1010 = vmatprep.subr.mxu0 0.0
    %1011 = vmatpush1.msra.mxu0 0.0
    %1012 = vmatprep.subr.mxu0 0.0
    %1013 = vmatpush1.msra.mxu0 0.0
    %1014 = vmatprep.subr.mxu0 0.0
    %1015 = vmatpush1.msra.mxu0 0.0
    %1016 = vmatprep.subr.mxu0 0.0
    %1017 = vmatpush1.msra.mxu0 0.0
    %1018 = vmatprep.subr.mxu0 0.0
    %1019 = vmatpush1.msra.mxu0 0.0
    %1020 = vmatprep.subr.mxu0 0.0
    %1021 = vmatpush1.msra.mxu0 0.0
    %1022 = vmatprep.subr.mxu0 0.0
    %1023 = vmatpush1.msra.mxu0 0.0
    %1024 = vmatprep.subr.mxu0 0.0
    %1025 = vmatpush1.msra.mxu0 0.0
    %1026 = vmatprep.subr.mxu0 0.0
    %1027 = vmatpush1.msra.mxu0 0.0
    %1028 = vmatprep.subr.mxu0 0.0
    %1029 = vmatpush1.msra.mxu0 0.0
    %1030 = vmatprep.subr.mxu0 0.0
    %1031 = vmatpush1.msra.mxu0 0.0
    %1032 = vmatprep.subr.mxu0 0.0
    %1033 = vmatpush1.msra.mxu0 0.0
    %1034 = vmatprep.subr.mxu0 0.0
    %1035 = vmatpush1.msra.mxu0 0.0
    %1036 = vmatprep.subr.mxu0 0.0
    %1037 = vmatpush1.msra.mxu0 0.0
    %1038 = vmatprep.subr.mxu0 0.0
    %1039 = vmatpush1.msra.mxu0 0.0
    %1040 = vmatprep.subr.mxu0 0.0
    %1041 = vmatpush1.msra.mxu0 0.0
    %1042 = vmatprep.mubr.f32.mxu0 0.0
    %v1043 = vand.u32 %v945, 4294901760
    %v1044 = vsub.f32 %v945, %v1043
    %v1045 = vand.u32 %v1044, 4294901760
    %v1046 = vsub.f32 %v1044, %v1045
    %v1047 = vand.u32 %v1046, 4294901760
    %1048 = vmatmul.mubr.f32.gmra.mrb[0].mxu0 %v1047
    %v1049 = vpop.f32.mrb[0].mxu0
    %v1050 = vadd.f32 0.0, %v1049
    %v1051 = vpop.f32.mrb[0].mxu0
    %1052 = vdwg.mxu0
    %1053 = vmatprep.subr.mxu0 0.0
    %v1054 = vand.u32 %v946, 4294901760
    %v1055 = vsub.f32 %v946, %v1054
    %v1056 = vand.u32 %v1055, 4294901760
    %v1057 = vsub.f32 %v1055, %v1056
    %v1058 = vand.u32 %v1057, 4294901760
    %1059 = vmatpush1.msra.mxu0 %v1058
    %1060 = vmatprep.subr.mxu0 0.0
    %v1061 = vand.u32 %v947, 4294901760
    %v1062 = vsub.f32 %v947, %v1061
    %v1063 = vand.u32 %v1062, 4294901760
    %v1064 = vsub.f32 %v1062, %v1063
    %v1065 = vand.u32 %v1064, 4294901760
    %1066 = vmatpush1.msra.mxu0 %v1065
    %1067 = vmatprep.subr.mxu0 0.0
    %v1068 = vand.u32 %v948, 4294901760
    %v1069 = vsub.f32 %v948, %v1068
    %v1070 = vand.u32 %v1069, 4294901760
    %v1071 = vsub.f32 %v1069, %v1070
    %v1072 = vand.u32 %v1071, 4294901760
    %1073 = vmatpush1.msra.mxu0 %v1072
    %1074 = vmatprep.subr.mxu0 0.0
    %v1075 = vand.u32 %v949, 4294901760
    %v1076 = vsub.f32 %v949, %v1075
    %v1077 = vand.u32 %v1076, 4294901760
    %v1078 = vsub.f32 %v1076, %v1077
    %v1079 = vand.u32 %v1078, 4294901760
    %1080 = vmatpush1.msra.mxu0 %v1079
    %1081 = vmatprep.subr.mxu0 0.0
    %v1082 = vand.u32 %v950, 4294901760
    %v1083 = vsub.f32 %v950, %v1082
    %v1084 = vand.u32 %v1083, 4294901760
    %v1085 = vsub.f32 %v1083, %v1084
    %v1086 = vand.u32 %v1085, 4294901760
    %1087 = vmatpush1.msra.mxu0 %v1086
    %1088 = vmatprep.subr.mxu0 0.0
    %v1089 = vand.u32 %v951, 4294901760
    %v1090 = vsub.f32 %v951, %v1089
    %v1091 = vand.u32 %v1090, 4294901760
    %v1092 = vsub.f32 %v1090, %v1091
    %v1093 = vand.u32 %v1092, 4294901760
    %1094 = vmatpush1.msra.mxu0 %v1093
    %1095 = vmatprep.subr.mxu0 0.0
    %v1096 = vand.u32 %v952, 4294901760
    %v1097 = vsub.f32 %v952, %v1096
    %v1098 = vand.u32 %v1097, 4294901760
    %v1099 = vsub.f32 %v1097, %v1098
    %v1100 = vand.u32 %v1099, 4294901760
    %1101 = vmatpush1.msra.mxu0 %v1100
    %1102 = vmatprep.subr.mxu0 0.0
    %v1103 = vand.u32 %v953, 4294901760
    %v1104 = vsub.f32 %v953, %v1103
    %v1105 = vand.u32 %v1104, 4294901760
    %v1106 = vsub.f32 %v1104, %v1105
    %v1107 = vand.u32 %v1106, 4294901760
    %1108 = vmatpush1.msra.mxu0 %v1107
    %1109 = vmatprep.subr.mxu0 0.0
    %v1110 = vand.u32 %v954, 4294901760
    %v1111 = vsub.f32 %v954, %v1110
    %v1112 = vand.u32 %v1111, 4294901760
    %v1113 = vsub.f32 %v1111, %v1112
    %v1114 = vand.u32 %v1113, 4294901760
    %1115 = vmatpush1.msra.mxu0 %v1114
    %1116 = vmatprep.subr.mxu0 0.0
    %v1117 = vand.u32 %v955, 4294901760
    %v1118 = vsub.f32 %v955, %v1117
    %v1119 = vand.u32 %v1118, 4294901760
    %v1120 = vsub.f32 %v1118, %v1119
    %v1121 = vand.u32 %v1120, 4294901760
    %1122 = vmatpush1.msra.mxu0 %v1121
    %1123 = vmatprep.subr.mxu0 0.0
    %v1124 = vand.u32 %v956, 4294901760
    %v1125 = vsub.f32 %v956, %v1124
    %v1126 = vand.u32 %v1125, 4294901760
    %v1127 = vsub.f32 %v1125, %v1126
    %v1128 = vand.u32 %v1127, 4294901760
    %1129 = vmatpush1.msra.mxu0 %v1128
    %1130 = vmatprep.subr.mxu0 0.0
    %v1131 = vand.u32 %v957, 4294901760
    %v1132 = vsub.f32 %v957, %v1131
    %v1133 = vand.u32 %v1132, 4294901760
    %v1134 = vsub.f32 %v1132, %v1133
    %v1135 = vand.u32 %v1134, 4294901760
    %1136 = vmatpush1.msra.mxu0 %v1135
    %1137 = vmatprep.subr.mxu0 0.0
    %v1138 = vand.u32 %v958, 4294901760
    %v1139 = vsub.f32 %v958, %v1138
    %v1140 = vand.u32 %v1139, 4294901760
    %v1141 = vsub.f32 %v1139, %v1140
    %v1142 = vand.u32 %v1141, 4294901760
    %1143 = vmatpush1.msra.mxu0 %v1142
    %1144 = vmatprep.subr.mxu0 0.0
    %v1145 = vand.u32 %v959, 4294901760
    %v1146 = vsub.f32 %v959, %v1145
    %v1147 = vand.u32 %v1146, 4294901760
    %v1148 = vsub.f32 %v1146, %v1147
    %v1149 = vand.u32 %v1148, 4294901760
    %1150 = vmatpush1.msra.mxu0 %v1149
    %1151 = vmatprep.subr.mxu0 0.0
    %v1152 = vand.u32 %v960, 4294901760
    %v1153 = vsub.f32 %v960, %v1152
    %v1154 = vand.u32 %v1153, 4294901760
    %v1155 = vsub.f32 %v1153, %v1154
    %v1156 = vand.u32 %v1155, 4294901760
    %1157 = vmatpush1.msra.mxu0 %v1156
    %1158 = vmatprep.subr.mxu0 0.0
    %v1159 = vand.u32 %v961, 4294901760
    %v1160 = vsub.f32 %v961, %v1159
    %v1161 = vand.u32 %v1160, 4294901760
    %v1162 = vsub.f32 %v1160, %v1161
    %v1163 = vand.u32 %v1162, 4294901760
    %1164 = vmatpush1.msra.mxu0 %v1163
    %1165 = vmatprep.subr.mxu0 0.0
    %1166 = vmatpush1.msra.mxu0 0.0
    %1167 = vmatprep.subr.mxu0 0.0
    %1168 = vmatpush1.msra.mxu0 0.0
    %1169 = vmatprep.subr.mxu0 0.0
    %1170 = vmatpush1.msra.mxu0 0.0
    %1171 = vmatprep.subr.mxu0 0.0
    %1172 = vmatpush1.msra.mxu0 0.0
    %1173 = vmatprep.subr.mxu0 0.0
    %1174 = vmatpush1.msra.mxu0 0.0
    %1175 = vmatprep.subr.mxu0 0.0
    %1176 = vmatpush1.msra.mxu0 0.0
    %1177 = vmatprep.subr.mxu0 0.0
    %1178 = vmatpush1.msra.mxu0 0.0
    %1179 = vmatprep.subr.mxu0 0.0
    %1180 = vmatpush1.msra.mxu0 0.0
    %1181 = vmatprep.subr.mxu0 0.0
    %1182 = vmatpush1.msra.mxu0 0.0
    %1183 = vmatprep.subr.mxu0 0.0
    %1184 = vmatpush1.msra.mxu0 0.0
    %1185 = vmatprep.subr.mxu0 0.0
    %1186 = vmatpush1.msra.mxu0 0.0
    %1187 = vmatprep.subr.mxu0 0.0
    %1188 = vmatpush1.msra.mxu0 0.0
    %1189 = vmatprep.subr.mxu0 0.0
    %1190 = vmatpush1.msra.mxu0 0.0
    %1191 = vmatprep.subr.mxu0 0.0
    %1192 = vmatpush1.msra.mxu0 0.0
    %1193 = vmatprep.subr.mxu0 0.0
    %1194 = vmatpush1.msra.mxu0 0.0
    %1195 = vmatprep.subr.mxu0 0.0
    %1196 = vmatpush1.msra.mxu0 0.0
    %1197 = vmatprep.mubr.f32.mxu0 0.0
    %v1198 = vand.u32 %v945, 4294901760
    %1199 = vmatmul.mubr.f32.gmra.mrb[0].mxu0 %v1198
    %v1200 = vpop.f32.mrb[0].mxu0
    %v1201 = vadd.f32 %v1050, %v1200
    %v1202 = vpop.f32.mrb[0].mxu0
    %1203 = vdwg.mxu0
    %1204 = vmatprep.subr.mxu0 0.0
    %v1205 = vand.u32 %v946, 4294901760
    %v1206 = vsub.f32 %v946, %v1205
    %1207 = vmatpush1.msra.mxu0 %v1206
    %1208 = vmatprep.subr.mxu0 0.0
    %v1209 = vand.u32 %v947, 4294901760
    %v1210 = vsub.f32 %v947, %v1209
    %1211 = vmatpush1.msra.mxu0 %v1210
    %1212 = vmatprep.subr.mxu0 0.0
    %v1213 = vand.u32 %v948, 4294901760
    %v1214 = vsub.f32 %v948, %v1213
    %1215 = vmatpush1.msra.mxu0 %v1214
    %1216 = vmatprep.subr.mxu0 0.0
    %v1217 = vand.u32 %v949, 4294901760
    %v1218 = vsub.f32 %v949, %v1217
    %1219 = vmatpush1.msra.mxu0 %v1218
    %1220 = vmatprep.subr.mxu0 0.0
    %v1221 = vand.u32 %v950, 4294901760
    %v1222 = vsub.f32 %v950, %v1221
    %1223 = vmatpush1.msra.mxu0 %v1222
    %1224 = vmatprep.subr.mxu0 0.0
    %v1225 = vand.u32 %v951, 4294901760
    %v1226 = vsub.f32 %v951, %v1225
    %1227 = vmatpush1.msra.mxu0 %v1226
    %1228 = vmatprep.subr.mxu0 0.0
    %v1229 = vand.u32 %v952, 4294901760
    %v1230 = vsub.f32 %v952, %v1229
    %1231 = vmatpush1.msra.mxu0 %v1230
    %1232 = vmatprep.subr.mxu0 0.0
    %v1233 = vand.u32 %v953, 4294901760
    %v1234 = vsub.f32 %v953, %v1233
    %1235 = vmatpush1.msra.mxu0 %v1234
    %1236 = vmatprep.subr.mxu0 0.0
    %v1237 = vand.u32 %v954, 4294901760
    %v1238 = vsub.f32 %v954, %v1237
    %1239 = vmatpush1.msra.mxu0 %v1238
    %1240 = vmatprep.subr.mxu0 0.0
    %v1241 = vand.u32 %v955, 4294901760
    %v1242 = vsub.f32 %v955, %v1241
    %1243 = vmatpush1.msra.mxu0 %v1242
    %1244 = vmatprep.subr.mxu0 0.0
    %v1245 = vand.u32 %v956, 4294901760
    %v1246 = vsub.f32 %v956, %v1245
    %1247 = vmatpush1.msra.mxu0 %v1246
    %1248 = vmatprep.subr.mxu0 0.0
    %v1249 = vand.u32 %v957, 4294901760
    %v1250 = vsub.f32 %v957, %v1249
    %1251 = vmatpush1.msra.mxu0 %v1250
    %1252 = vmatprep.subr.mxu0 0.0
    %v1253 = vand.u32 %v958, 4294901760
    %v1254 = vsub.f32 %v958, %v1253
    %1255 = vmatpush1.msra.mxu0 %v1254
    %1256 = vmatprep.subr.mxu0 0.0
    %v1257 = vand.u32 %v959, 4294901760
    %v1258 = vsub.f32 %v959, %v1257
    %1259 = vmatpush1.msra.mxu0 %v1258
    %1260 = vmatprep.subr.mxu0 0.0
    %v1261 = vand.u32 %v960, 4294901760
    %v1262 = vsub.f32 %v960, %v1261
    %1263 = vmatpush1.msra.mxu0 %v1262
    %1264 = vmatprep.subr.mxu0 0.0
    %v1265 = vand.u32 %v961, 4294901760
    %v1266 = vsub.f32 %v961, %v1265
    %1267 = vmatpush1.msra.mxu0 %v1266
    %1268 = vmatprep.subr.mxu0 0.0
    %1269 = vmatpush1.msra.mxu0 0.0
    %1270 = vmatprep.subr.mxu0 0.0
    %1271 = vmatpush1.msra.mxu0 0.0
    %1272 = vmatprep.subr.mxu0 0.0
    %1273 = vmatpush1.msra.mxu0 0.0
    %1274 = vmatprep.subr.mxu0 0.0
    %1275 = vmatpush1.msra.mxu0 0.0
    %1276 = vmatprep.subr.mxu0 0.0
    %1277 = vmatpush1.msra.mxu0 0.0
    %1278 = vmatprep.subr.mxu0 0.0
    %1279 = vmatpush1.msra.mxu0 0.0
    %1280 = vmatprep.subr.mxu0 0.0
    %1281 = vmatpush1.msra.mxu0 0.0
    %1282 = vmatprep.subr.mxu0 0.0
    %1283 = vmatpush1.msra.mxu0 0.0
    %1284 = vmatprep.subr.mxu0 0.0
    %1285 = vmatpush1.msra.mxu0 0.0
    %1286 = vmatprep.subr.mxu0 0.0
    %1287 = vmatpush1.msra.mxu0 0.0
    %1288 = vmatprep.subr.mxu0 0.0
    %1289 = vmatpush1.msra.mxu0 0.0
    %1290 = vmatprep.subr.mxu0 0.0
    %1291 = vmatpush1.msra.mxu0 0.0
    %1292 = vmatprep.subr.mxu0 0.0
    %1293 = vmatpush1.msra.mxu0 0.0
    %1294 = vmatprep.subr.mxu0 0.0
    %1295 = vmatpush1.msra.mxu0 0.0
    %1296 = vmatprep.subr.mxu0 0.0
    %1297 = vmatpush1.msra.mxu0 0.0
    %1298 = vmatprep.subr.mxu0 0.0
    %1299 = vmatpush1.msra.mxu0 0.0
    %1300 = vmatprep.mubr.f32.mxu0 0.0
    %v1301 = vand.u32 %v945, 4294901760
    %v1302 = vsub.f32 %v945, %v1301
    %1303 = vmatmul.mubr.f32.gmra.mrb[0].mxu0 %v1302
    %v1304 = vpop.f32.mrb[0].mxu0
    %v1305 = vadd.f32 %v1201, %v1304
    %v1306 = vpop.f32.mrb[0].mxu0
    %1307 = vdwg.mxu0
    %1308 = vmatprep.subr.mxu0 0.0
    %v1309 = vand.u32 %v946, 4294901760
    %1310 = vmatpush1.msra.mxu0 %v1309
    %1311 = vmatprep.subr.mxu0 0.0
    %v1312 = vand.u32 %v947, 4294901760
    %1313 = vmatpush1.msra.mxu0 %v1312
    %1314 = vmatprep.subr.mxu0 0.0
    %v1315 = vand.u32 %v948, 4294901760
    %1316 = vmatpush1.msra.mxu0 %v1315
    %1317 = vmatprep.subr.mxu0 0.0
    %v1318 = vand.u32 %v949, 4294901760
    %1319 = vmatpush1.msra.mxu0 %v1318
    %1320 = vmatprep.subr.mxu0 0.0
    %v1321 = vand.u32 %v950, 4294901760
    %1322 = vmatpush1.msra.mxu0 %v1321
    %1323 = vmatprep.subr.mxu0 0.0
    %v1324 = vand.u32 %v951, 4294901760
    %1325 = vmatpush1.msra.mxu0 %v1324
    %1326 = vmatprep.subr.mxu0 0.0
    %v1327 = vand.u32 %v952, 4294901760
    %1328 = vmatpush1.msra.mxu0 %v1327
    %1329 = vmatprep.subr.mxu0 0.0
    %v1330 = vand.u32 %v953, 4294901760
    %1331 = vmatpush1.msra.mxu0 %v1330
    %1332 = vmatprep.subr.mxu0 0.0
    %v1333 = vand.u32 %v954, 4294901760
    %1334 = vmatpush1.msra.mxu0 %v1333
    %1335 = vmatprep.subr.mxu0 0.0
    %v1336 = vand.u32 %v955, 4294901760
    %1337 = vmatpush1.msra.mxu0 %v1336
    %1338 = vmatprep.subr.mxu0 0.0
    %v1339 = vand.u32 %v956, 4294901760
    %1340 = vmatpush1.msra.mxu0 %v1339
    %1341 = vmatprep.subr.mxu0 0.0
    %v1342 = vand.u32 %v957, 4294901760
    %1343 = vmatpush1.msra.mxu0 %v1342
    %1344 = vmatprep.subr.mxu0 0.0
    %v1345 = vand.u32 %v958, 4294901760
    %1346 = vmatpush1.msra.mxu0 %v1345
    %1347 = vmatprep.subr.mxu0 0.0
    %v1348 = vand.u32 %v959, 4294901760
    %1349 = vmatpush1.msra.mxu0 %v1348
    %1350 = vmatprep.subr.mxu0 0.0
    %v1351 = vand.u32 %v960, 4294901760
    %1352 = vmatpush1.msra.mxu0 %v1351
    %1353 = vmatprep.subr.mxu0 0.0
    %v1354 = vand.u32 %v961, 4294901760
    %1355 = vmatpush1.msra.mxu0 %v1354
    %1356 = vmatprep.subr.mxu0 0.0
    %1357 = vmatpush1.msra.mxu0 0.0
    %1358 = vmatprep.subr.mxu0 0.0
    %1359 = vmatpush1.msra.mxu0 0.0
    %1360 = vmatprep.subr.mxu0 0.0
    %1361 = vmatpush1.msra.mxu0 0.0
    %1362 = vmatprep.subr.mxu0 0.0
    %1363 = vmatpush1.msra.mxu0 0.0
    %1364 = vmatprep.subr.mxu0 0.0
    %1365 = vmatpush1.msra.mxu0 0.0
    %1366 = vmatprep.subr.mxu0 0.0
    %1367 = vmatpush1.msra.mxu0 0.0
    %1368 = vmatprep.subr.mxu0 0.0
    %1369 = vmatpush1.msra.mxu0 0.0
    %1370 = vmatprep.subr.mxu0 0.0
    %1371 = vmatpush1.msra.mxu0 0.0
    %1372 = vmatprep.subr.mxu0 0.0
    %1373 = vmatpush1.msra.mxu0 0.0
    %1374 = vmatprep.subr.mxu0 0.0
    %1375 = vmatpush1.msra.mxu0 0.0
    %1376 = vmatprep.subr.mxu0 0.0
    %1377 = vmatpush1.msra.mxu0 0.0
    %1378 = vmatprep.subr.mxu0 0.0
    %1379 = vmatpush1.msra.mxu0 0.0
    %1380 = vmatprep.subr.mxu0 0.0
    %1381 = vmatpush1.msra.mxu0 0.0
    %1382 = vmatprep.subr.mxu0 0.0
    %1383 = vmatpush1.msra.mxu0 0.0
    %1384 = vmatprep.subr.mxu0 0.0
    %1385 = vmatpush1.msra.mxu0 0.0
    %1386 = vmatprep.subr.mxu0 0.0
    %1387 = vmatpush1.msra.mxu0 0.0
    %1388 = vmatprep.mubr.f32.mxu0 0.0
    %v1389 = vand.u32 %v945, 4294901760
    %v1390 = vsub.f32 %v945, %v1389
    %v1391 = vand.u32 %v1390, 4294901760
    %1392 = vmatmul.mubr.f32.gmra.mrb[0].mxu0 %v1391
    %v1393 = vpop.f32.mrb[0].mxu0
    %v1394 = vadd.f32 %v1305, %v1393
    %v1395 = vpop.f32.mrb[0].mxu0
    %1396 = vdwg.mxu0
    %1397 = vmatprep.subr.mxu0 0.0
    %v1398 = vand.u32 %v946, 4294901760
    %v1399 = vsub.f32 %v946, %v1398
    %v1400 = vand.u32 %v1399, 4294901760
    %1401 = vmatpush1.msra.mxu0 %v1400
    %1402 = vmatprep.subr.mxu0 0.0
    %v1403 = vand.u32 %v947, 4294901760
    %v1404 = vsub.f32 %v947, %v1403
    %v1405 = vand.u32 %v1404, 4294901760
    %1406 = vmatpush1.msra.mxu0 %v1405
    %1407 = vmatprep.subr.mxu0 0.0
    %v1408 = vand.u32 %v948, 4294901760
    %v1409 = vsub.f32 %v948, %v1408
    %v1410 = vand.u32 %v1409, 4294901760
    %1411 = vmatpush1.msra.mxu0 %v1410
    %1412 = vmatprep.subr.mxu0 0.0
    %v1413 = vand.u32 %v949, 4294901760
    %v1414 = vsub.f32 %v949, %v1413
    %v1415 = vand.u32 %v1414, 4294901760
    %1416 = vmatpush1.msra.mxu0 %v1415
    %1417 = vmatprep.subr.mxu0 0.0
    %v1418 = vand.u32 %v950, 4294901760
    %v1419 = vsub.f32 %v950, %v1418
    %v1420 = vand.u32 %v1419, 4294901760
    %1421 = vmatpush1.msra.mxu0 %v1420
    %1422 = vmatprep.subr.mxu0 0.0
    %v1423 = vand.u32 %v951, 4294901760
    %v1424 = vsub.f32 %v951, %v1423
    %v1425 = vand.u32 %v1424, 4294901760
    %1426 = vmatpush1.msra.mxu0 %v1425
    %1427 = vmatprep.subr.mxu0 0.0
    %v1428 = vand.u32 %v952, 4294901760
    %v1429 = vsub.f32 %v952, %v1428
    %v1430 = vand.u32 %v1429, 4294901760
    %1431 = vmatpush1.msra.mxu0 %v1430
    %1432 = vmatprep.subr.mxu0 0.0
    %v1433 = vand.u32 %v953, 4294901760
    %v1434 = vsub.f32 %v953, %v1433
    %v1435 = vand.u32 %v1434, 4294901760
    %1436 = vmatpush1.msra.mxu0 %v1435
    %1437 = vmatprep.subr.mxu0 0.0
    %v1438 = vand.u32 %v954, 4294901760
    %v1439 = vsub.f32 %v954, %v1438
    %v1440 = vand.u32 %v1439, 4294901760
    %1441 = vmatpush1.msra.mxu0 %v1440
    %1442 = vmatprep.subr.mxu0 0.0
    %v1443 = vand.u32 %v955, 4294901760
    %v1444 = vsub.f32 %v955, %v1443
    %v1445 = vand.u32 %v1444, 4294901760
    %1446 = vmatpush1.msra.mxu0 %v1445
    %1447 = vmatprep.subr.mxu0 0.0
    %v1448 = vand.u32 %v956, 4294901760
    %v1449 = vsub.f32 %v956, %v1448
    %v1450 = vand.u32 %v1449, 4294901760
    %1451 = vmatpush1.msra.mxu0 %v1450
    %1452 = vmatprep.subr.mxu0 0.0
    %v1453 = vand.u32 %v957, 4294901760
    %v1454 = vsub.f32 %v957, %v1453
    %v1455 = vand.u32 %v1454, 4294901760
    %1456 = vmatpush1.msra.mxu0 %v1455
    %1457 = vmatprep.subr.mxu0 0.0
    %v1458 = vand.u32 %v958, 4294901760
    %v1459 = vsub.f32 %v958, %v1458
    %v1460 = vand.u32 %v1459, 4294901760
    %1461 = vmatpush1.msra.mxu0 %v1460
    %1462 = vmatprep.subr.mxu0 0.0
    %v1463 = vand.u32 %v959, 4294901760
    %v1464 = vsub.f32 %v959, %v1463
    %v1465 = vand.u32 %v1464, 4294901760
    %1466 = vmatpush1.msra.mxu0 %v1465
    %1467 = vmatprep.subr.mxu0 0.0
    %v1468 = vand.u32 %v960, 4294901760
    %v1469 = vsub.f32 %v960, %v1468
    %v1470 = vand.u32 %v1469, 4294901760
    %1471 = vmatpush1.msra.mxu0 %v1470
    %1472 = vmatprep.subr.mxu0 0.0
    %v1473 = vand.u32 %v961, 4294901760
    %v1474 = vsub.f32 %v961, %v1473
    %v1475 = vand.u32 %v1474, 4294901760
    %1476 = vmatpush1.msra.mxu0 %v1475
    %1477 = vmatprep.subr.mxu0 0.0
    %1478 = vmatpush1.msra.mxu0 0.0
    %1479 = vmatprep.subr.mxu0 0.0
    %1480 = vmatpush1.msra.mxu0 0.0
    %1481 = vmatprep.subr.mxu0 0.0
    %1482 = vmatpush1.msra.mxu0 0.0
    %1483 = vmatprep.subr.mxu0 0.0
    %1484 = vmatpush1.msra.mxu0 0.0
    %1485 = vmatprep.subr.mxu0 0.0
    %1486 = vmatpush1.msra.mxu0 0.0
    %1487 = vmatprep.subr.mxu0 0.0
    %1488 = vmatpush1.msra.mxu0 0.0
    %1489 = vmatprep.subr.mxu0 0.0
    %1490 = vmatpush1.msra.mxu0 0.0
    %1491 = vmatprep.subr.mxu0 0.0
    %1492 = vmatpush1.msra.mxu0 0.0
    %1493 = vmatprep.subr.mxu0 0.0
    %1494 = vmatpush1.msra.mxu0 0.0
    %1495 = vmatprep.subr.mxu0 0.0
    %1496 = vmatpush1.msra.mxu0 0.0
    %1497 = vmatprep.subr.mxu0 0.0
    %1498 = vmatpush1.msra.mxu0 0.0
    %1499 = vmatprep.subr.mxu0 0.0
    %1500 = vmatpush1.msra.mxu0 0.0
    %1501 = vmatprep.subr.mxu0 0.0
    %1502 = vmatpush1.msra.mxu0 0.0
    %1503 = vmatprep.subr.mxu0 0.0
    %1504 = vmatpush1.msra.mxu0 0.0
    %1505 = vmatprep.subr.mxu0 0.0
    %1506 = vmatpush1.msra.mxu0 0.0
    %1507 = vmatprep.subr.mxu0 0.0
    %1508 = vmatpush1.msra.mxu0 0.0
    %1509 = vmatprep.mubr.f32.mxu0 0.0
    %v1510 = vand.u32 %v945, 4294901760
    %1511 = vmatmul.mubr.f32.gmra.mrb[0].mxu0 %v1510
    %v1512 = vpop.f32.mrb[0].mxu0
    %v1513 = vadd.f32 %v1394, %v1512
    %v1514 = vpop.f32.mrb[0].mxu0
    %1515 = vdwg.mxu0
    %1516 = vmatprep.subr.mxu0 0.0
    %v1517 = vand.u32 %v946, 4294901760
    %1518 = vmatpush1.msra.mxu0 %v1517
    %1519 = vmatprep.subr.mxu0 0.0
    %v1520 = vand.u32 %v947, 4294901760
    %1521 = vmatpush1.msra.mxu0 %v1520
    %1522 = vmatprep.subr.mxu0 0.0
    %v1523 = vand.u32 %v948, 4294901760
    %1524 = vmatpush1.msra.mxu0 %v1523
    %1525 = vmatprep.subr.mxu0 0.0
    %v1526 = vand.u32 %v949, 4294901760
    %1527 = vmatpush1.msra.mxu0 %v1526
    %1528 = vmatprep.subr.mxu0 0.0
    %v1529 = vand.u32 %v950, 4294901760
    %1530 = vmatpush1.msra.mxu0 %v1529
    %1531 = vmatprep.subr.mxu0 0.0
    %v1532 = vand.u32 %v951, 4294901760
    %1533 = vmatpush1.msra.mxu0 %v1532
    %1534 = vmatprep.subr.mxu0 0.0
    %v1535 = vand.u32 %v952, 4294901760
    %1536 = vmatpush1.msra.mxu0 %v1535
    %1537 = vmatprep.subr.mxu0 0.0
    %v1538 = vand.u32 %v953, 4294901760
    %1539 = vmatpush1.msra.mxu0 %v1538
    %1540 = vmatprep.subr.mxu0 0.0
    %v1541 = vand.u32 %v954, 4294901760
    %1542 = vmatpush1.msra.mxu0 %v1541
    %1543 = vmatprep.subr.mxu0 0.0
    %v1544 = vand.u32 %v955, 4294901760
    %1545 = vmatpush1.msra.mxu0 %v1544
    %1546 = vmatprep.subr.mxu0 0.0
    %v1547 = vand.u32 %v956, 4294901760
    %1548 = vmatpush1.msra.mxu0 %v1547
    %1549 = vmatprep.subr.mxu0 0.0
    %v1550 = vand.u32 %v957, 4294901760
    %1551 = vmatpush1.msra.mxu0 %v1550
    %1552 = vmatprep.subr.mxu0 0.0
    %v1553 = vand.u32 %v958, 4294901760
    %1554 = vmatpush1.msra.mxu0 %v1553
    %1555 = vmatprep.subr.mxu0 0.0
    %v1556 = vand.u32 %v959, 4294901760
    %1557 = vmatpush1.msra.mxu0 %v1556
    %1558 = vmatprep.subr.mxu0 0.0
    %v1559 = vand.u32 %v960, 4294901760
    %1560 = vmatpush1.msra.mxu0 %v1559
    %1561 = vmatprep.subr.mxu0 0.0
    %v1562 = vand.u32 %v961, 4294901760
    %1563 = vmatpush1.msra.mxu0 %v1562
    %1564 = vmatprep.subr.mxu0 0.0
    %1565 = vmatpush1.msra.mxu0 0.0
    %1566 = vmatprep.subr.mxu0 0.0
    %1567 = vmatpush1.msra.mxu0 0.0
    %1568 = vmatprep.subr.mxu0 0.0
    %1569 = vmatpush1.msra.mxu0 0.0
    %1570 = vmatprep.subr.mxu0 0.0
    %1571 = vmatpush1.msra.mxu0 0.0
    %1572 = vmatprep.subr.mxu0 0.0
    %1573 = vmatpush1.msra.mxu0 0.0
    %1574 = vmatprep.subr.mxu0 0.0
    %1575 = vmatpush1.msra.mxu0 0.0
    %1576 = vmatprep.subr.mxu0 0.0
    %1577 = vmatpush1.msra.mxu0 0.0
    %1578 = vmatprep.subr.mxu0 0.0
    %1579 = vmatpush1.msra.mxu0 0.0
    %1580 = vmatprep.subr.mxu0 0.0
    %1581 = vmatpush1.msra.mxu0 0.0
    %1582 = vmatprep.subr.mxu0 0.0
    %1583 = vmatpush1.msra.mxu0 0.0
    %1584 = vmatprep.subr.mxu0 0.0
    %1585 = vmatpush1.msra.mxu0 0.0
    %1586 = vmatprep.subr.mxu0 0.0
    %1587 = vmatpush1.msra.mxu0 0.0
    %1588 = vmatprep.subr.mxu0 0.0
    %1589 = vmatpush1.msra.mxu0 0.0
    %1590 = vmatprep.subr.mxu0 0.0
    %1591 = vmatpush1.msra.mxu0 0.0
    %1592 = vmatprep.subr.mxu0 0.0
    %1593 = vmatpush1.msra.mxu0 0.0
    %1594 = vmatprep.subr.mxu0 0.0
    %1595 = vmatpush1.msra.mxu0 0.0
    %1596 = vmatprep.mubr.f32.mxu0 0.0
    %v1597 = vand.u32 %v945, 4294901760
    %1598 = vmatmul.mubr.f32.gmra.mrb[0].mxu0 %v1597
    %v1599 = vpop.f32.mrb[0].mxu0
    %v1600 = vadd.f32 %v1513, %v1599
    %v1601 = vpop.f32.mrb[0].mxu0
    %1602 = vdwg.mxu0
    %v1603 = vadd.f32 %v940, %v1600
    %v1604 = vmul.f32 %v1603, 0.5
    %v1605 = vtanh.pop %v1604
    %v1606 = vadd.f32 %v1605, 1.0
    %v1607 = vmul.f32 %v1606, 0.5
    %1608 = vst [vmem:[#allocation8] sm:$0xff] %v945
    %1609 = vst [vmem:[#allocation8 + $0x8] sm:$0xff] %v1607
    // Predicated region
    $region26: #{tpu_custom_call.1} parent=1 // pred_check
      _
    $region27: #{tpu_custom_call.1} parent=1 // pred_check_branch
      %1611 = sbr.rel (0) target = $region29
    $region28: #{tpu_custom_call.1} parent=1 // pred_region
      %s1613 = ssub.s32 256, 256
      %1614 = vsyncadd [#allocation4], %s1613
      %s1616 = sshll.u32 [#allocation8], 4
      %s1617 = int_to_ptr.vmem [resolvable:$true] %s1616
      %1619 = dma.vmem_to_hbm [thread:$0]  %s1617, 256, %s3, [#allocation4]
    $region29: #{tpu_custom_call.1} parent=1 // pred_fallthru
      _
    // Predicated region
    $region30: #{tpu_custom_call.1} parent=1 // pred_check
      _
    $region31: #{tpu_custom_call.1} parent=1 // pred_check_branch
      %1621 = sbr.rel (0) target = $region33
    $region32: #{tpu_custom_call.1} parent=1 // pred_region
      %1622 = dma.done [#allocation4], 256
    $region33: #{tpu_custom_call.1} parent=1 // pred_fallthru
      _
    %1623 = vsyncpa [#allocation3], 1
    %1624 = vsyncpa [#allocation6], 1
    %1625 = vsyncpa [#allocation4], 1

</llo_original>
